<compile_context>
chip_gen: v7x
topology: tpu7x:2x2x1
jax: 0.10.0
libtpu: 0.0.40
codegen_flags: <defaults>
</compile_context>

<pallas_src>
import functools

import jax
import jax.numpy as jnp
from jax.experimental import pallas as pl
from jax.experimental.pallas import tpu as pltpu

_MIB = 1024 * 1024


def _round_up(n, m):
    return ((n + m - 1) // m) * m


def _fused_forward_kernel(x_ref, noise_ref, w6_ref, w1_ref, w2_ref, bias_ref,
                          out_ref, *, d_in):
    f32 = jnp.float32
    bf16 = jnp.bfloat16

    # Packed f32 bias slab: row 0 = b1[0:256], row 1[:128] = b2, row 2[:6] = b_out.
    b1 = bias_ref[0:1, :]
    b2 = bias_ref[1:2, 0:128]
    b_out = bias_ref[2:3, 0:6]

    # feature_fusion(enhanced_features):
    #   Linear(128,256) -> ReLU -> Dropout(id) -> Linear(256,128) -> ReLU -> Dropout(id)
    h = jnp.dot(noise_ref[...].astype(bf16), w1_ref[...],
                preferred_element_type=f32) + b1
    h = jnp.maximum(h, 0.0)
    h = jnp.dot(h.astype(bf16), w2_ref[...], preferred_element_type=f32) + b2
    h = jnp.maximum(h, 0.0)

    # Folded base path + final layer (concat-free; algebraically identical to
    # final_layer(cat([h, base_projection(base_model(x))], dim=1))).
    w_base = w6_ref[0:d_in, :]      # [D_in, 6] = wb @ wp @ Wf[128:]   (bf16)
    w_fh = w6_ref[d_in:, :]         # [128, 6]  = Wf[:128]             (bf16)
    # x arrives f32 straight from HBM; the bf16 cast is fused here so the
    # wrapper never makes an extra full pass over x.
    # TODO(synk): for very large d_in add a last 'arbitrary' grid axis over
    # d_in with an f32 (TM,6) scratch accumulator instead of a full-width tile.
    # TODO(synk): small-batch option: pltpu.matmul_push_rhs to keep the 6-wide
    # RHS staged across LHS groups (only after a bundle dump confirms staging
    # dominates the vector-extended slot).
    x_bf = x_ref[...].astype(bf16)
    out = (jnp.dot(x_bf, w_base, preferred_element_type=f32)
           + jnp.dot(h.astype(bf16), w_fh, preferred_element_type=f32)
           + b_out)
    out_ref[...] = out.astype(out_ref.dtype)


def _vmem_budget_bytes():
    """Per-generation scoped-VMEM request (~0.78x physical, capped at 100 MiB)."""
    phys = 64 * _MIB                      # conservative default == v7x physical
    try:
        info = pltpu.get_tpu_info()
        for attr in ("vmem_capacity_bytes", "vmem_size_bytes", "vmem_bytes"):
            val = getattr(info, attr, None)
            if val:
                phys = int(val)
                break
    except Exception:
        pass
    # v5e/v6e (128 MiB physical) -> ~100 MiB; v7x (64 MiB) -> ~50 MiB.
    return max(min(int(phys * 0.78), 100 * _MIB), 32 * _MIB)


def _plan_tiling(B, d_in, vmem_budget):
    """Pick batch tile TM: as large as VMEM allows (<=1024 rows), multiple of
    16 (bf16 sublane packing), exact for tiny B, and split into >=2 grid steps
    for v7x megacore whenever the tile can stay >= 256 rows."""
    d_pad = _round_up(d_in, 128)
    per_row = (2 * d_pad * 4              # x tile (f32), double-buffered
               + 2 * 128 * 4              # noise tile (f32), double-buffered
               + 2 * 128 * 4              # out tile (6 lanes pad to 128), 2 bufs
               + d_pad * 2                # in-kernel bf16 copy of the x tile
               + (256 + 128 + 128) * 4)   # h1 / h2 / out f32 intermediates
    resident = (_round_up(d_in + 128, 16) * 128 * 2   # w6 (lane-padded bf16)
                + 128 * 256 * 2 + 256 * 128 * 2       # w1, w2 (bf16)
                + 8 * 256 * 4)                        # bias slab (f32)
    # Assume 2 copies of resident slabs in case Buffered(1) is unsupported.
    avail = vmem_budget - 2 * resident - 4 * _MIB
    rows_fit = max(int(avail) // per_row, 16)
    tm_cap = max(16, min(1024, rows_fit) // 16 * 16)

    if B <= 16:
        return B                          # exact single block; no ragged rows
    b16 = _round_up(B, 16)
    tm = min(tm_cap, b16)
    if tm >= b16 and b16 >= 512:
        # Split so both v7x TensorCores get work while keeping >= 256 rows/tile.
        tm = min(tm, _round_up(b16 // 2, 16))
    return tm


def _build_call(B, d_in, TM, vmem_limit, shapes, single_buffer_weights):
    w6_shape, w1_shape, w2_shape, bias_shape = shapes
    weight_kw = {}
    if single_buffer_weights:
        # Loop-invariant operands only need a single VMEM buffer.
        weight_kw["pipeline_mode"] = pl.Buffered(1)

    def wspec(shape):
        return pl.BlockSpec(shape, lambda i: (0, 0), **weight_kw)

    flops = 2 * B * (d_in * 6 + 128 * 256 + 256 * 128 + 128 * 6)
    bytes_accessed = (B * d_in * 4 + B * 128 * 4 + B * 6 * 4
                      + (w6_shape[0] * w6_shape[1] + 128 * 256 + 256 * 128) * 2
                      + bias_shape[0] * bias_shape[1] * 4)

    kernel = functools.partial(_fused_forward_kernel, d_in=d_in)
    return pl.pallas_call(
        kernel,
        out_shape=jax.ShapeDtypeStruct((B, 6), jnp.float32),
        grid_spec=pltpu.PrefetchScalarGridSpec(
            num_scalar_prefetch=0,
            grid=(pl.cdiv(B, TM),),
            in_specs=[
                # x streamed per batch tile (f32 in HBM; cast to bf16 in-kernel).
                # TODO(synk): on v5e add pipeline_mode=pl.Buffered(3) here if
                # xprof shows exposed DMA after the larger TM.
                pl.BlockSpec((TM, d_in), lambda i: (i, 0)),
                pl.BlockSpec((TM, 128), lambda i: (i, 0)),    # noise tile
                wspec(w6_shape),                              # resident weight slab
                wspec(w1_shape),                              # resident
                wspec(w2_shape),                              # resident
                wspec(bias_shape),                            # resident bias slab
            ],
            out_specs=pl.BlockSpec((TM, 6), lambda i: (i, 0)),
        ),
        compiler_params=pltpu.CompilerParams(
            dimension_semantics=("parallel",),   # batch tiles split across TCs (v7x)
            vmem_limit_bytes=int(vmem_limit),
        ),
        cost_estimate=pl.CostEstimate(
            flops=int(flops), transcendentals=0,
            bytes_accessed=int(bytes_accessed)),
    )


def enhanced_spectrogram_forward(x, noise, params):
    """x: [B, C, H, W] f32, noise: [B, 128] f32 -> [B, 6] float32."""
    B = x.shape[0]
    x_flat = x.reshape(B, -1)             # torch .view(B,-1); no pad/cast pass
    d_in = x_flat.shape[1]

    w6, w1, w2, bias = params["w6"], params["w1"], params["w2"], params["bias"]
    assert w6.shape[0] == d_in + 128

    vmem_limit = _vmem_budget_bytes()
    TM = _plan_tiling(B, d_in, vmem_limit)
    shapes = (w6.shape, w1.shape, w2.shape, bias.shape)
    args = (x_flat, noise, w6, w1, w2, bias)
    try:
        out = _build_call(B, d_in, TM, vmem_limit, shapes, True)(*args)
        return jax.block_until_ready(out)
    except Exception:
        # Fallback for Pallas versions that reject pipeline_mode=pl.Buffered(1)
        # on pallas_call BlockSpecs (weights then get the default 2 buffers).
        return _build_call(B, d_in, TM, vmem_limit, shapes, False)(*args)


def _linear_params(key, fan_in, fan_out):
    """PyTorch nn.Linear default init: U(-1/sqrt(fan_in), 1/sqrt(fan_in)).

    Weight stored transposed ([in, out]) so the kernel does x @ W directly.
    """
    kw, kb = jax.random.split(key)
    bound = 1.0 / float(fan_in) ** 0.5
    w = jax.random.uniform(kw, (fan_in, fan_out), jnp.float32, -bound, bound)
    b = jax.random.uniform(kb, (1, fan_out), jnp.float32, -bound, bound)
    return w, b


def build_params(key, d_in, base_dim=64):
    k_base, k_proj, k_f1, k_f2, k_fin = jax.random.split(key, 5)
    wb, bb = _linear_params(k_base, d_in, base_dim)   # base_model Linear
    wp, bp = _linear_params(k_proj, base_dim, 6)      # base_projection (64 != 6 path)
    w1, b1 = _linear_params(k_f1, 128, 256)           # feature_fusion[0]
    w2, b2 = _linear_params(k_f2, 256, 128)           # feature_fusion[3]
    wf, bf = _linear_params(k_fin, 128 + 6, 6)        # final_layer
    wfh, wfb = wf[:128, :], wf[128:, :]

    # --- offline fold of the purely linear base path (f32) ---
    w_base = wb @ wp @ wfb                            # [d_in, 6]
    b_out = bb @ wp @ wfb + bp @ wfb + bf             # [1, 6]

    # --- coalesced bf16 / f32 slabs for the kernel ---
    w6 = jnp.concatenate([w_base, wfh], axis=0).astype(jnp.bfloat16)  # [d_in+128, 6]
    bias = jnp.zeros((3, 256), jnp.float32)
    bias = bias.at[0, :256].set(b1[0])
    bias = bias.at[1, :128].set(b2[0])
    bias = bias.at[2, :6].set(b_out[0])

    packed = dict(w6=w6, w1=w1.astype(jnp.bfloat16),
                  w2=w2.astype(jnp.bfloat16), bias=bias)
    raw = dict(wb=wb, bb=bb, wp=wp, bp=bp, w1=w1, b1=b1, w2=w2, b2=b2,
               wf=wf, bf=bf)
    return packed, raw


def _reference_forward(x, noise, raw):
    """Unfolded f32 reference mirroring the torch forward (for validation)."""
    x_flat = x.reshape(x.shape[0], -1)
    base = x_flat @ raw["wb"] + raw["bb"]
    base6 = base @ raw["wp"] + raw["bp"]
    h = jnp.maximum(noise @ raw["w1"] + raw["b1"], 0.0)
    h = jnp.maximum(h @ raw["w2"] + raw["b2"], 0.0)
    cat = jnp.concatenate([h, base6], axis=1)
    return cat @ raw["wf"] + raw["bf"]


if __name__ == "__main__":
    key = jax.random.PRNGKey(0)
    k_x, k_noise, k_params, k_x2, k_n2 = jax.random.split(key, 5)

    # Small deterministic example input, NCHW.
    B, C, H, W = 2, 4, 16, 16
    x = jax.random.normal(k_x, (B, C, H, W), jnp.float32)
    # torch.randn(batch_size, 128) stand-in (deterministic).
    noise = jax.random.normal(k_noise, (B, 128), jnp.float32)

    params, raw = build_params(k_params, C * H * W)

    out = enhanced_spectrogram_forward(x, noise, params)
    out = jax.block_until_ready(out)
    assert out.shape == (B, 6) and out.dtype == jnp.float32
    ref = _reference_forward(x, noise, raw)
    max_err = float(jnp.max(jnp.abs(out - ref)))
    assert max_err < 0.1, f"max abs err {max_err}"

    # Larger batch exercises the multi-step, megacore-parallel tiling path
    # (TM=256, 2 grid steps, no wrapper-side pad).
    B2 = 512
    x2 = jax.random.normal(k_x2, (B2, C, H, W), jnp.float32)
    noise2 = jax.random.normal(k_n2, (B2, 128), jnp.float32)
    out2 = jax.block_until_ready(enhanced_spectrogram_forward(x2, noise2, params))
    assert out2.shape == (B2, 6) and out2.dtype == jnp.float32
    ref2 = _reference_forward(x2, noise2, raw)
    max_err2 = float(jnp.max(jnp.abs(out2 - ref2)))
    assert max_err2 < 0.1, f"max abs err (B=512) {max_err2}"

    print("KERNEL_OK")
</pallas_src>

<mosaic_0001>
module attributes {stable_mosaic.version = 11 : i64} {
  func.func @_fused_forward_kernel(%arg0: i32, %arg1: memref<2x1024xf32, #tpu.memory_space<vmem>>, %arg2: memref<2x128xf32, #tpu.memory_space<vmem>>, %arg3: memref<1152x6xbf16, #tpu.memory_space<vmem>>, %arg4: memref<128x256xbf16, #tpu.memory_space<vmem>>, %arg5: memref<256x128xbf16, #tpu.memory_space<vmem>>, %arg6: memref<3x256xf32, #tpu.memory_space<vmem>>, %arg7: memref<2x6xf32, #tpu.memory_space<vmem>>) attributes {dimension_semantics = [#tpu.dimension_semantics<parallel>], iteration_bounds = array<i64: 1>, scalar_prefetch = 0 : i64, scratch_operands = 0 : i64, tpu.core_type = #tpu.core_type<tc>, window_params = [{transform_indices = @transform_0, window_bounds = array<i64: 2, 1024>}, {transform_indices = @transform_1, window_bounds = array<i64: 2, 128>}, {pipeline_mode = #tpu.pipeline_mode<synchronous>, transform_indices = @transform_2, window_bounds = array<i64: 1152, 6>}, {pipeline_mode = #tpu.pipeline_mode<synchronous>, transform_indices = @transform_3, window_bounds = array<i64: 128, 256>}, {pipeline_mode = #tpu.pipeline_mode<synchronous>, transform_indices = @transform_4, window_bounds = array<i64: 256, 128>}, {pipeline_mode = #tpu.pipeline_mode<synchronous>, transform_indices = @transform_5, window_bounds = array<i64: 3, 256>}, {transform_indices = @transform_6, window_bounds = array<i64: 2, 6>}]} {
    %c0 = arith.constant 0 : index
    %c0_0 = arith.constant 0 : index
    %0 = vector.load %arg6[%c0, %c0_0] : memref<3x256xf32, #tpu.memory_space<vmem>>, vector<1x256xf32>
    %c1 = arith.constant 1 : index
    %c0_1 = arith.constant 0 : index
    %1 = vector.load %arg6[%c1, %c0_1] : memref<3x256xf32, #tpu.memory_space<vmem>>, vector<1x128xf32>
    %c2 = arith.constant 2 : index
    %c0_2 = arith.constant 0 : index
    %2 = vector.load %arg6[%c2, %c0_2] : memref<3x256xf32, #tpu.memory_space<vmem>>, vector<1x6xf32>
    %c0_3 = arith.constant 0 : index
    %c0_4 = arith.constant 0 : index
    %3 = vector.load %arg2[%c0_3, %c0_4] : memref<2x128xf32, #tpu.memory_space<vmem>>, vector<2x128xf32>
    %4 = arith.truncf %3 : vector<2x128xf32> to vector<2x128xbf16>
    %c0_5 = arith.constant 0 : index
    %c0_6 = arith.constant 0 : index
    %5 = vector.load %arg4[%c0_5, %c0_6] : memref<128x256xbf16, #tpu.memory_space<vmem>>, vector<128x256xbf16>
    %cst = arith.constant dense<0.000000e+00> : vector<2x256xf32>
    %6 = tpu.matmul %4, %5, %cst {dimension_numbers = #tpu.dot_dimension_numbers<[1], [0], [0], [1], [0, 0, 1, 1], [], []>} : vector<2x128xbf16>, vector<128x256xbf16>, vector<2x256xf32> -> vector<2x256xf32>
    %7 = vector.broadcast %0 : vector<1x256xf32> to vector<2x256xf32>
    %8 = arith.addf %6, %7 : vector<2x256xf32>
    %cst_7 = arith.constant 0.000000e+00 : f32
    %9 = vector.broadcast %cst_7 : f32 to vector<2x256xf32>
    %10 = arith.maximumf %8, %9 : vector<2x256xf32>
    %11 = arith.truncf %10 : vector<2x256xf32> to vector<2x256xbf16>
    %c0_8 = arith.constant 0 : index
    %c0_9 = arith.constant 0 : index
    %12 = vector.load %arg5[%c0_8, %c0_9] : memref<256x128xbf16, #tpu.memory_space<vmem>>, vector<256x128xbf16>
    %cst_10 = arith.constant dense<0.000000e+00> : vector<2x128xf32>
    %13 = tpu.matmul %11, %12, %cst_10 {dimension_numbers = #tpu.dot_dimension_numbers<[1], [0], [0], [1], [0, 0, 1, 1], [], []>} : vector<2x256xbf16>, vector<256x128xbf16>, vector<2x128xf32> -> vector<2x128xf32>
    %14 = vector.broadcast %1 : vector<1x128xf32> to vector<2x128xf32>
    %15 = arith.addf %13, %14 : vector<2x128xf32>
    %cst_11 = arith.constant 0.000000e+00 : f32
    %16 = vector.broadcast %cst_11 : f32 to vector<2x128xf32>
    %17 = arith.maximumf %15, %16 : vector<2x128xf32>
    %c0_12 = arith.constant 0 : index
    %c0_13 = arith.constant 0 : index
    %18 = vector.load %arg3[%c0_12, %c0_13] : memref<1152x6xbf16, #tpu.memory_space<vmem>>, vector<1024x6xbf16>
    %c1024 = arith.constant 1024 : index
    %c0_14 = arith.constant 0 : index
    %19 = vector.load %arg3[%c1024, %c0_14] : memref<1152x6xbf16, #tpu.memory_space<vmem>>, vector<128x6xbf16>
    %c0_15 = arith.constant 0 : index
    %c0_16 = arith.constant 0 : index
    %20 = vector.load %arg1[%c0_15, %c0_16] : memref<2x1024xf32, #tpu.memory_space<vmem>>, vector<2x1024xf32>
    %21 = arith.truncf %20 : vector<2x1024xf32> to vector<2x1024xbf16>
    %cst_17 = arith.constant dense<0.000000e+00> : vector<2x6xf32>
    %22 = tpu.matmul %21, %18, %cst_17 {dimension_numbers = #tpu.dot_dimension_numbers<[1], [0], [0], [1], [0, 0, 1, 1], [], []>} : vector<2x1024xbf16>, vector<1024x6xbf16>, vector<2x6xf32> -> vector<2x6xf32>
    %23 = arith.truncf %17 : vector<2x128xf32> to vector<2x128xbf16>
    %cst_18 = arith.constant dense<0.000000e+00> : vector<2x6xf32>
    %24 = tpu.matmul %23, %19, %cst_18 {dimension_numbers = #tpu.dot_dimension_numbers<[1], [0], [0], [1], [0, 0, 1, 1], [], []>} : vector<2x128xbf16>, vector<128x6xbf16>, vector<2x6xf32> -> vector<2x6xf32>
    %25 = arith.addf %22, %24 : vector<2x6xf32>
    %26 = vector.broadcast %2 : vector<1x6xf32> to vector<2x6xf32>
    %27 = arith.addf %25, %26 : vector<2x6xf32>
    %c0_19 = arith.constant 0 : index
    %c0_20 = arith.constant 0 : index
    %28 = vector.load %arg7[%c0_19, %c0_20] : memref<2x6xf32, #tpu.memory_space<vmem>>, vector<2x6xf32>
    tpu.vector_store %arg7[%c0_19, %c0_20], %27 {strides = array<i32>} : memref<2x6xf32, #tpu.memory_space<vmem>>, vector<2x6xf32>,
    return
  }
  func.func @transform_0(%arg0: i32) -> (i32, i32) {
    %c0_i32 = arith.constant 0 : i32
    %c0_i32_0 = arith.constant 0 : i32
    return %arg0, %c0_i32 : i32, i32
  }
  func.func @transform_1(%arg0: i32) -> (i32, i32) {
    %c0_i32 = arith.constant 0 : i32
    %c0_i32_0 = arith.constant 0 : i32
    return %arg0, %c0_i32 : i32, i32
  }
  func.func @transform_2(%arg0: i32) -> (i32, i32) {
    %c0_i32 = arith.constant 0 : i32
    %c0_i32_0 = arith.constant 0 : i32
    %c0_i32_1 = arith.constant 0 : i32
    return %c0_i32, %c0_i32_0 : i32, i32
  }
  func.func @transform_3(%arg0: i32) -> (i32, i32) {
    %c0_i32 = arith.constant 0 : i32
    %c0_i32_0 = arith.constant 0 : i32
    %c0_i32_1 = arith.constant 0 : i32
    return %c0_i32, %c0_i32_0 : i32, i32
  }
  func.func @transform_4(%arg0: i32) -> (i32, i32) {
    %c0_i32 = arith.constant 0 : i32
    %c0_i32_0 = arith.constant 0 : i32
    %c0_i32_1 = arith.constant 0 : i32
    return %c0_i32, %c0_i32_0 : i32, i32
  }
  func.func @transform_5(%arg0: i32) -> (i32, i32) {
    %c0_i32 = arith.constant 0 : i32
    %c0_i32_0 = arith.constant 0 : i32
    %c0_i32_1 = arith.constant 0 : i32
    return %c0_i32, %c0_i32_0 : i32, i32
  }
  func.func @transform_6(%arg0: i32) -> (i32, i32) {
    %c0_i32 = arith.constant 0 : i32
    %c0_i32_0 = arith.constant 0 : i32
    return %arg0, %c0_i32 : i32, i32
  }
}

module attributes {stable_mosaic.version = 11 : i64} {
  func.func @_fused_forward_kernel(%arg0: i32, %arg1: memref<2x1024xf32, #tpu.memory_space<vmem>>, %arg2: memref<2x128xf32, #tpu.memory_space<vmem>>, %arg3: memref<1152x6xbf16, #tpu.memory_space<vmem>>, %arg4: memref<128x256xbf16, #tpu.memory_space<vmem>>, %arg5: memref<256x128xbf16, #tpu.memory_space<vmem>>, %arg6: memref<3x256xf32, #tpu.memory_space<vmem>>, %arg7: memref<2x6xf32, #tpu.memory_space<vmem>>) attributes {dimension_semantics = [#tpu.dimension_semantics<parallel>], iteration_bounds = array<i64: 1>, scalar_prefetch = 0 : i64, scratch_operands = 0 : i64, tpu.core_type = #tpu.core_type<tc>, window_params = [{transform_indices = @transform_0, window_bounds = array<i64: 2, 1024>}, {transform_indices = @transform_1, window_bounds = array<i64: 2, 128>}, {pipeline_mode = #tpu.pipeline_mode<synchronous>, transform_indices = @transform_2, window_bounds = array<i64: 1152, 6>}, {pipeline_mode = #tpu.pipeline_mode<synchronous>, transform_indices = @transform_3, window_bounds = array<i64: 128, 256>}, {pipeline_mode = #tpu.pipeline_mode<synchronous>, transform_indices = @transform_4, window_bounds = array<i64: 256, 128>}, {pipeline_mode = #tpu.pipeline_mode<synchronous>, transform_indices = @transform_5, window_bounds = array<i64: 3, 256>}, {transform_indices = @transform_6, window_bounds = array<i64: 2, 6>}]} {
    %c0 = arith.constant 0 : index
    %c0_0 = arith.constant 0 : index
    %0 = vector.load %arg6[%c0, %c0_0] : memref<3x256xf32, #tpu.memory_space<vmem>>, vector<1x256xf32>
    %c1 = arith.constant 1 : index
    %c0_1 = arith.constant 0 : index
    %1 = vector.load %arg6[%c1, %c0_1] : memref<3x256xf32, #tpu.memory_space<vmem>>, vector<1x128xf32>
    %c2 = arith.constant 2 : index
    %c0_2 = arith.constant 0 : index
    %2 = vector.load %arg6[%c2, %c0_2] : memref<3x256xf32, #tpu.memory_space<vmem>>, vector<1x6xf32>
    %c0_3 = arith.constant 0 : index
    %c0_4 = arith.constant 0 : index
    %3 = vector.load %arg2[%c0_3, %c0_4] : memref<2x128xf32, #tpu.memory_space<vmem>>, vector<2x128xf32>
    %4 = arith.truncf %3 : vector<2x128xf32> to vector<2x128xbf16>
    %c0_5 = arith.constant 0 : index
    %c0_6 = arith.constant 0 : index
    %5 = vector.load %arg4[%c0_5, %c0_6] : memref<128x256xbf16, #tpu.memory_space<vmem>>, vector<128x256xbf16>
    %cst = arith.constant dense<0.000000e+00> : vector<2x256xf32>
    %6 = tpu.matmul %4, %5, %cst {dimension_numbers = #tpu.dot_dimension_numbers<[1], [0], [0], [1], [0, 0, 1, 1], [], []>} : vector<2x128xbf16>, vector<128x256xbf16>, vector<2x256xf32> -> vector<2x256xf32>
    %7 = vector.broadcast %0 : vector<1x256xf32> to vector<2x256xf32>
    %8 = arith.addf %6, %7 : vector<2x256xf32>
    %cst_7 = arith.constant 0.000000e+00 : f32
    %9 = vector.broadcast %cst_7 : f32 to vector<2x256xf32>
    %10 = arith.maximumf %8, %9 : vector<2x256xf32>
    %11 = arith.truncf %10 : vector<2x256xf32> to vector<2x256xbf16>
    %c0_8 = arith.constant 0 : index
    %c0_9 = arith.constant 0 : index
    %12 = vector.load %arg5[%c0_8, %c0_9] : memref<256x128xbf16, #tpu.memory_space<vmem>>, vector<256x128xbf16>
    %cst_10 = arith.constant dense<0.000000e+00> : vector<2x128xf32>
    %13 = tpu.matmul %11, %12, %cst_10 {dimension_numbers = #tpu.dot_dimension_numbers<[1], [0], [0], [1], [0, 0, 1, 1], [], []>} : vector<2x256xbf16>, vector<256x128xbf16>, vector<2x128xf32> -> vector<2x128xf32>
    %14 = vector.broadcast %1 : vector<1x128xf32> to vector<2x128xf32>
    %15 = arith.addf %13, %14 : vector<2x128xf32>
    %cst_11 = arith.constant 0.000000e+00 : f32
    %16 = vector.broadcast %cst_11 : f32 to vector<2x128xf32>
    %17 = arith.maximumf %15, %16 : vector<2x128xf32>
    %c0_12 = arith.constant 0 : index
    %c0_13 = arith.constant 0 : index
    %18 = vector.load %arg3[%c0_12, %c0_13] : memref<1152x6xbf16, #tpu.memory_space<vmem>>, vector<1024x6xbf16>
    %c1024 = arith.constant 1024 : index
    %c0_14 = arith.constant 0 : index
    %19 = vector.load %arg3[%c1024, %c0_14] : memref<1152x6xbf16, #tpu.memory_space<vmem>>, vector<128x6xbf16>
    %c0_15 = arith.constant 0 : index
    %c0_16 = arith.constant 0 : index
    %20 = vector.load %arg1[%c0_15, %c0_16] : memref<2x1024xf32, #tpu.memory_space<vmem>>, vector<2x1024xf32>
    %21 = arith.truncf %20 : vector<2x1024xf32> to vector<2x1024xbf16>
    %cst_17 = arith.constant dense<0.000000e+00> : vector<2x6xf32>
    %22 = tpu.matmul %21, %18, %cst_17 {dimension_numbers = #tpu.dot_dimension_numbers<[1], [0], [0], [1], [0, 0, 1, 1], [], []>} : vector<2x1024xbf16>, vector<1024x6xbf16>, vector<2x6xf32> -> vector<2x6xf32>
    %23 = arith.truncf %17 : vector<2x128xf32> to vector<2x128xbf16>
    %cst_18 = arith.constant dense<0.000000e+00> : vector<2x6xf32>
    %24 = tpu.matmul %23, %19, %cst_18 {dimension_numbers = #tpu.dot_dimension_numbers<[1], [0], [0], [1], [0, 0, 1, 1], [], []>} : vector<2x128xbf16>, vector<128x6xbf16>, vector<2x6xf32> -> vector<2x6xf32>
    %25 = arith.addf %22, %24 : vector<2x6xf32>
    %26 = vector.broadcast %2 : vector<1x6xf32> to vector<2x6xf32>
    %27 = arith.addf %25, %26 : vector<2x6xf32>
    %c0_19 = arith.constant 0 : index
    %c0_20 = arith.constant 0 : index
    %28 = vector.load %arg7[%c0_19, %c0_20] : memref<2x6xf32, #tpu.memory_space<vmem>>, vector<2x6xf32>
    tpu.vector_store %arg7[%c0_19, %c0_20], %27 {strides = array<i32>} : memref<2x6xf32, #tpu.memory_space<vmem>>, vector<2x6xf32>,
    return
  }
  func.func @transform_0(%arg0: i32) -> (i32, i32) {
    %c0_i32 = arith.constant 0 : i32
    %c0_i32_0 = arith.constant 0 : i32
    return %arg0, %c0_i32 : i32, i32
  }
  func.func @transform_1(%arg0: i32) -> (i32, i32) {
    %c0_i32 = arith.constant 0 : i32
    %c0_i32_0 = arith.constant 0 : i32
    return %arg0, %c0_i32 : i32, i32
  }
  func.func @transform_2(%arg0: i32) -> (i32, i32) {
    %c0_i32 = arith.constant 0 : i32
    %c0_i32_0 = arith.constant 0 : i32
    %c0_i32_1 = arith.constant 0 : i32
    return %c0_i32, %c0_i32_0 : i32, i32
  }
  func.func @transform_3(%arg0: i32) -> (i32, i32) {
    %c0_i32 = arith.constant 0 : i32
    %c0_i32_0 = arith.constant 0 : i32
    %c0_i32_1 = arith.constant 0 : i32
    return %c0_i32, %c0_i32_0 : i32, i32
  }
  func.func @transform_4(%arg0: i32) -> (i32, i32) {
    %c0_i32 = arith.constant 0 : i32
    %c0_i32_0 = arith.constant 0 : i32
    %c0_i32_1 = arith.constant 0 : i32
    return %c0_i32, %c0_i32_0 : i32, i32
  }
  func.func @transform_5(%arg0: i32) -> (i32, i32) {
    %c0_i32 = arith.constant 0 : i32
    %c0_i32_0 = arith.constant 0 : i32
    %c0_i32_1 = arith.constant 0 : i32
    return %c0_i32, %c0_i32_0 : i32, i32
  }
  func.func @transform_6(%arg0: i32) -> (i32, i32) {
    %c0_i32 = arith.constant 0 : i32
    %c0_i32_0 = arith.constant 0 : i32
    return %arg0, %c0_i32 : i32, i32
  }
}

</mosaic_0001>

<llo_original>
// kernel: tpu_custom_call.1
$region0: #{tpu_custom_call.1}
  #allocation0 [shape = 'u32[]', space=smem, size = 0x4, offset = 0x4, fixed_abs, tag = 'smem constant byte address 0x4 - core index']
  #allocation1 [shape = 'u32[144,128]{1,0:T(1,128)}', space=vmem, size = 0x12000, scoped, tag = 'internal scratch']
  %s0 = inlined_call_operand.vmem [shape: f32[2,1024], index: 0, kind: input, shape index: {}]
  %s1 = inlined_call_operand.vmem [shape: f32[2,128], index: 1, kind: input, shape index: {}]
  %s2 = inlined_call_operand.vmem [shape: bf16[1152,6], index: 2, kind: input, shape index: {}]
  %s3 = inlined_call_operand.vmem [shape: bf16[128,256], index: 3, kind: input, shape index: {}]
  %s4 = inlined_call_operand.vmem [shape: bf16[256,128], index: 4, kind: input, shape index: {}]
  %s5 = inlined_call_operand.vmem [shape: f32[3,256], index: 5, kind: input, shape index: {}]
  %s6 = inlined_call_operand.hbm [shape: f32[2,6], index: 6, kind: output, shape index: {}]
  %s7 = sld [smem:[#allocation0]]
  $region34: #{tpu_custom_call.1} parent=0
    _
  %s9 = ssub.s32 1, %s7
  %s10 = scalar_select 0, %s9, %s7
  $region1: #{tpu_custom_call.1} parent=0
    #allocation2 [shape = 'u8[1024]{0}', space=vmem, size = 0x400, scoped, tag = 'output window, operand 0, single buffered']
    #allocation3 [shape = 's32[1]{0}', space=sflag, size = 0x4, scoped, tag = 'scoped memory for tpu_custom_call.1']
    %11 = vsyncpa [#allocation3], 0
    // Predicated region
    $region2: #{tpu_custom_call.1} parent=1 // pred_check
      _
    $region3: #{tpu_custom_call.1} parent=1 // pred_check_branch
      %13 = sbr.rel (0) target = $region5
    $region4: #{tpu_custom_call.1} parent=1 // pred_region
      _
    $region5: #{tpu_custom_call.1} parent=1 // pred_fallthru
      _
    // Predicated region
    $region6: #{tpu_custom_call.1} parent=1 // pred_check
      _
    $region7: #{tpu_custom_call.1} parent=1 // pred_check_branch
      %15 = sbr.rel (0) target = $region9
    $region8: #{tpu_custom_call.1} parent=1 // pred_region
      _
    $region9: #{tpu_custom_call.1} parent=1 // pred_fallthru
      _
    // Predicated region
    $region10: #{tpu_custom_call.1} parent=1 // pred_check
      _
    $region11: #{tpu_custom_call.1} parent=1 // pred_check_branch
      %17 = sbr.rel (0) target = $region13
    $region12: #{tpu_custom_call.1} parent=1 // pred_region
      _
    $region13: #{tpu_custom_call.1} parent=1 // pred_fallthru
      _
    // Predicated region
    $region14: #{tpu_custom_call.1} parent=1 // pred_check
      _
    $region15: #{tpu_custom_call.1} parent=1 // pred_check_branch
      %19 = sbr.rel (0) target = $region17
    $region16: #{tpu_custom_call.1} parent=1 // pred_region
      _
    $region17: #{tpu_custom_call.1} parent=1 // pred_fallthru
      _
    // Predicated region
    $region18: #{tpu_custom_call.1} parent=1 // pred_check
      _
    $region19: #{tpu_custom_call.1} parent=1 // pred_check_branch
      %21 = sbr.rel (0) target = $region21
    $region20: #{tpu_custom_call.1} parent=1 // pred_region
      _
    $region21: #{tpu_custom_call.1} parent=1 // pred_fallthru
      _
    // Predicated region
    $region22: #{tpu_custom_call.1} parent=1 // pred_check
      _
    $region23: #{tpu_custom_call.1} parent=1 // pred_check_branch
      %23 = sbr.rel (0) target = $region25
    $region24: #{tpu_custom_call.1} parent=1 // pred_region
      _
    $region25: #{tpu_custom_call.1} parent=1 // pred_fallthru
      _
    %v25 = vld [vmem:[%s5] ss:$4 sm:$0x3]
    %v26 = vld [vmem:[%s5 + $0x1] sm:$0x1]
    %v27 = vld [vmem:[%s5 + $0x2] sm:$0x1]
    %v28 = vld [vmem:[%s1] sm:$0x3]
    %v29 = vpack.c.bf16 %v28, %v28
    %v30 = vld [vmem:[%s3] sm:$0xff]
    %v31 = vld [vmem:[%s3 + $0x8] sm:$0xff]
    %v32 = vld [vmem:[%s3 + $0x10] sm:$0xff]
    %v33 = vld [vmem:[%s3 + $0x18] sm:$0xff]
    %v34 = vld [vmem:[%s3 + $0x20] sm:$0xff]
    %v35 = vld [vmem:[%s3 + $0x28] sm:$0xff]
    %v36 = vld [vmem:[%s3 + $0x30] sm:$0xff]
    %v37 = vld [vmem:[%s3 + $0x38] sm:$0xff]
    %v38 = vld [vmem:[%s3 + $0x40] sm:$0xff]
    %v39 = vld [vmem:[%s3 + $0x48] sm:$0xff]
    %v40 = vld [vmem:[%s3 + $0x50] sm:$0xff]
    %v41 = vld [vmem:[%s3 + $0x58] sm:$0xff]
    %v42 = vld [vmem:[%s3 + $0x60] sm:$0xff]
    %v43 = vld [vmem:[%s3 + $0x68] sm:$0xff]
    %v44 = vld [vmem:[%s3 + $0x70] sm:$0xff]
    %v45 = vld [vmem:[%s3 + $0x78] sm:$0xff]
    %v47 = vlaneseq
    %v48 = vshrl.u32 %v47, 7
    %v49 = vsub.s32 0, %v48
    %v50 = vrot.slane %v25, %v49
    %v51 = vlaneseq
    %v52 = vshrl.u32 %v51, 7
    %v53 = vsub.s32 1, %v52
    %v54 = vrot.slane %v25, %v53
    %v73 = vunpack.c.l.b16 %v30
    %v74 = vunpack.c.h.b16 %v30
    %v75 = vunpack.c.l.b16 %v31
    %v76 = vunpack.c.h.b16 %v31
    %v77 = vunpack.c.l.b16 %v32
    %v78 = vunpack.c.h.b16 %v32
    %v79 = vunpack.c.l.b16 %v33
    %v80 = vunpack.c.h.b16 %v33
    %v81 = vunpack.c.l.b16 %v34
    %v82 = vunpack.c.h.b16 %v34
    %v83 = vunpack.c.l.b16 %v35
    %v84 = vunpack.c.h.b16 %v35
    %v85 = vunpack.c.l.b16 %v36
    %v86 = vunpack.c.h.b16 %v36
    %v87 = vunpack.c.l.b16 %v37
    %v88 = vunpack.c.h.b16 %v37
    %v89 = vunpack.c.l.b16 %v38
    %v90 = vunpack.c.h.b16 %v38
    %v91 = vunpack.c.l.b16 %v39
    %v92 = vunpack.c.h.b16 %v39
    %v93 = vunpack.c.l.b16 %v40
    %v94 = vunpack.c.h.b16 %v40
    %v95 = vunpack.c.l.b16 %v41
    %v96 = vunpack.c.h.b16 %v41
    %v97 = vunpack.c.l.b16 %v42
    %v98 = vunpack.c.h.b16 %v42
    %v99 = vunpack.c.l.b16 %v43
    %v100 = vunpack.c.h.b16 %v43
    %v101 = vunpack.c.l.b16 %v44
    %v102 = vunpack.c.h.b16 %v44
    %v103 = vunpack.c.l.b16 %v45
    %v104 = vunpack.c.h.b16 %v45
    %v105 = vpack.c.b16 %v75, %v73
    %v106 = vpack.c.b16 %v76, %v74
    %v107 = vpack.c.b16 %v79, %v77
    %v108 = vpack.c.b16 %v80, %v78
    %v109 = vpack.c.b16 %v83, %v81
    %v110 = vpack.c.b16 %v84, %v82
    %v111 = vpack.c.b16 %v87, %v85
    %v112 = vpack.c.b16 %v88, %v86
    %v113 = vpack.c.b16 %v91, %v89
    %v114 = vpack.c.b16 %v92, %v90
    %v115 = vpack.c.b16 %v95, %v93
    %v116 = vpack.c.b16 %v96, %v94
    %v117 = vpack.c.b16 %v99, %v97
    %v118 = vpack.c.b16 %v100, %v98
    %v119 = vpack.c.b16 %v103, %v101
    %v120 = vpack.c.b16 %v104, %v102
    %137 = vmatprep.subr.bf16.mxu0 %v106
    %138 = vmatpush1.bf16.msra.mxu0 %v105
    %139 = vmatprep.subr.bf16.mxu0 %v108
    %140 = vmatpush1.bf16.msra.mxu0 %v107
    %141 = vmatprep.subr.bf16.mxu0 %v110
    %142 = vmatpush1.bf16.msra.mxu0 %v109
    %143 = vmatprep.subr.bf16.mxu0 %v112
    %144 = vmatpush1.bf16.msra.mxu0 %v111
    %145 = vmatprep.subr.bf16.mxu0 %v114
    %146 = vmatpush1.bf16.msra.mxu0 %v113
    %147 = vmatprep.subr.bf16.mxu0 %v116
    %148 = vmatpush1.bf16.msra.mxu0 %v115
    %149 = vmatprep.subr.bf16.mxu0 %v118
    %150 = vmatpush1.bf16.msra.mxu0 %v117
    %151 = vmatprep.subr.bf16.mxu0 %v120
    %152 = vmatpush1.bf16.msra.mxu0 %v119
    %153 = vmatprep.subr.bf16.mxu0 0
    %154 = vmatpush1.bf16.msra.mxu0 0
    %155 = vmatprep.subr.bf16.mxu0 0
    %156 = vmatpush1.bf16.msra.mxu0 0
    %157 = vmatprep.subr.bf16.mxu0 0
    %158 = vmatpush1.bf16.msra.mxu0 0
    %159 = vmatprep.subr.bf16.mxu0 0
    %160 = vmatpush1.bf16.msra.mxu0 0
    %161 = vmatprep.subr.bf16.mxu0 0
    %162 = vmatpush1.bf16.msra.mxu0 0
    %163 = vmatprep.subr.bf16.mxu0 0
    %164 = vmatpush1.bf16.msra.mxu0 0
    %165 = vmatprep.subr.bf16.mxu0 0
    %166 = vmatpush1.bf16.msra.mxu0 0
    %167 = vmatprep.subr.bf16.mxu0 0
    %168 = vmatpush1.bf16.msra.mxu0 0
    %169 = vmatprep.mubr.bf16.mxu0 0
    %170 = vmatmul.mubr.bf16.gmra.mrb[0].mxu0 %v29
    %v171 = vpop.f32.mrb[0].mxu0
    %v172 = vadd.f32 %v50, %v171
    %v173 = vpop.f32.mrb[0].mxu0
    %v174 = vadd.f32 %v54, %v173
    %v175 = vpop.f32.mrb[0].mxu0
    %v176 = vpop.f32.mrb[0].mxu0
    %177 = vdwg.mxu0
    %v178 = vmax.f32 %v172, 0.0
    %v179 = vmax.f32 %v174, 0.0
    %v180 = vpack.c.bf16 %v178, %v178
    %v181 = vpack.c.bf16 %v179, %v179
    %v182 = vld [vmem:[%s4] sm:$0xf]
    %v183 = vld [vmem:[%s4 + $0x4] sm:$0xf]
    %v184 = vld [vmem:[%s4 + $0x8] sm:$0xf]
    %v185 = vld [vmem:[%s4 + $0xc] sm:$0xf]
    %v186 = vld [vmem:[%s4 + $0x10] sm:$0xf]
    %v187 = vld [vmem:[%s4 + $0x14] sm:$0xf]
    %v188 = vld [vmem:[%s4 + $0x18] sm:$0xf]
    %v189 = vld [vmem:[%s4 + $0x1c] sm:$0xf]
    %v190 = vld [vmem:[%s4 + $0x20] sm:$0xf]
    %v191 = vld [vmem:[%s4 + $0x24] sm:$0xf]
    %v192 = vld [vmem:[%s4 + $0x28] sm:$0xf]
    %v193 = vld [vmem:[%s4 + $0x2c] sm:$0xf]
    %v194 = vld [vmem:[%s4 + $0x30] sm:$0xf]
    %v195 = vld [vmem:[%s4 + $0x34] sm:$0xf]
    %v196 = vld [vmem:[%s4 + $0x38] sm:$0xf]
    %v197 = vld [vmem:[%s4 + $0x3c] sm:$0xf]
    %v198 = vld [vmem:[%s4 + $0x40] sm:$0xf]
    %v199 = vld [vmem:[%s4 + $0x44] sm:$0xf]
    %v200 = vld [vmem:[%s4 + $0x48] sm:$0xf]
    %v201 = vld [vmem:[%s4 + $0x4c] sm:$0xf]
    %v202 = vld [vmem:[%s4 + $0x50] sm:$0xf]
    %v203 = vld [vmem:[%s4 + $0x54] sm:$0xf]
    %v204 = vld [vmem:[%s4 + $0x58] sm:$0xf]
    %v205 = vld [vmem:[%s4 + $0x5c] sm:$0xf]
    %v206 = vld [vmem:[%s4 + $0x60] sm:$0xf]
    %v207 = vld [vmem:[%s4 + $0x64] sm:$0xf]
    %v208 = vld [vmem:[%s4 + $0x68] sm:$0xf]
    %v209 = vld [vmem:[%s4 + $0x6c] sm:$0xf]
    %v210 = vld [vmem:[%s4 + $0x70] sm:$0xf]
    %v211 = vld [vmem:[%s4 + $0x74] sm:$0xf]
    %v212 = vld [vmem:[%s4 + $0x78] sm:$0xf]
    %v213 = vld [vmem:[%s4 + $0x7c] sm:$0xf]
    %v214 = vlaneseq
    %v215 = vshrl.u32 %v214, 7
    %v216 = vsub.s32 0, %v215
    %v217 = vrot.slane %v26, %v216
    %v250 = vunpack.c.l.b16 %v182
    %v251 = vunpack.c.l.b16 %v183
    %v252 = vunpack.c.l.b16 %v184
    %v253 = vunpack.c.l.b16 %v185
    %v254 = vunpack.c.l.b16 %v186
    %v255 = vunpack.c.l.b16 %v187
    %v256 = vunpack.c.l.b16 %v188
    %v257 = vunpack.c.l.b16 %v189
    %v258 = vunpack.c.l.b16 %v190
    %v259 = vunpack.c.l.b16 %v191
    %v260 = vunpack.c.l.b16 %v192
    %v261 = vunpack.c.l.b16 %v193
    %v262 = vunpack.c.l.b16 %v194
    %v263 = vunpack.c.l.b16 %v195
    %v264 = vunpack.c.l.b16 %v196
    %v265 = vunpack.c.l.b16 %v197
    %v266 = vunpack.c.l.b16 %v198
    %v267 = vunpack.c.l.b16 %v199
    %v268 = vunpack.c.l.b16 %v200
    %v269 = vunpack.c.l.b16 %v201
    %v270 = vunpack.c.l.b16 %v202
    %v271 = vunpack.c.l.b16 %v203
    %v272 = vunpack.c.l.b16 %v204
    %v273 = vunpack.c.l.b16 %v205
    %v274 = vunpack.c.l.b16 %v206
    %v275 = vunpack.c.l.b16 %v207
    %v276 = vunpack.c.l.b16 %v208
    %v277 = vunpack.c.l.b16 %v209
    %v278 = vunpack.c.l.b16 %v210
    %v279 = vunpack.c.l.b16 %v211
    %v280 = vunpack.c.l.b16 %v212
    %v281 = vunpack.c.l.b16 %v213
    %v282 = vpack.c.b16 %v251, %v250
    %v283 = vpack.c.b16 %v253, %v252
    %v284 = vpack.c.b16 %v255, %v254
    %v285 = vpack.c.b16 %v257, %v256
    %v286 = vpack.c.b16 %v259, %v258
    %v287 = vpack.c.b16 %v261, %v260
    %v288 = vpack.c.b16 %v263, %v262
    %v289 = vpack.c.b16 %v265, %v264
    %v290 = vpack.c.b16 %v267, %v266
    %v291 = vpack.c.b16 %v269, %v268
    %v292 = vpack.c.b16 %v271, %v270
    %v293 = vpack.c.b16 %v273, %v272
    %v294 = vpack.c.b16 %v275, %v274
    %v295 = vpack.c.b16 %v277, %v276
    %v296 = vpack.c.b16 %v279, %v278
    %v297 = vpack.c.b16 %v281, %v280
    %314 = vmatprep.subr.bf16.mxu0 0
    %315 = vmatpush1.bf16.msra.mxu0 %v282
    %316 = vmatprep.subr.bf16.mxu0 0
    %317 = vmatpush1.bf16.msra.mxu0 %v283
    %318 = vmatprep.subr.bf16.mxu0 0
    %319 = vmatpush1.bf16.msra.mxu0 %v284
    %320 = vmatprep.subr.bf16.mxu0 0
    %321 = vmatpush1.bf16.msra.mxu0 %v285
    %322 = vmatprep.subr.bf16.mxu0 0
    %323 = vmatpush1.bf16.msra.mxu0 %v286
    %324 = vmatprep.subr.bf16.mxu0 0
    %325 = vmatpush1.bf16.msra.mxu0 %v287
    %326 = vmatprep.subr.bf16.mxu0 0
    %327 = vmatpush1.bf16.msra.mxu0 %v288
    %328 = vmatprep.subr.bf16.mxu0 0
    %329 = vmatpush1.bf16.msra.mxu0 %v289
    %330 = vmatprep.subr.bf16.mxu0 0
    %331 = vmatpush1.bf16.msra.mxu0 %v290
    %332 = vmatprep.subr.bf16.mxu0 0
    %333 = vmatpush1.bf16.msra.mxu0 %v291
    %334 = vmatprep.subr.bf16.mxu0 0
    %335 = vmatpush1.bf16.msra.mxu0 %v292
    %336 = vmatprep.subr.bf16.mxu0 0
    %337 = vmatpush1.bf16.msra.mxu0 %v293
    %338 = vmatprep.subr.bf16.mxu0 0
    %339 = vmatpush1.bf16.msra.mxu0 %v294
    %340 = vmatprep.subr.bf16.mxu0 0
    %341 = vmatpush1.bf16.msra.mxu0 %v295
    %342 = vmatprep.subr.bf16.mxu0 0
    %343 = vmatpush1.bf16.msra.mxu0 %v296
    %344 = vmatprep.subr.bf16.mxu0 0
    %345 = vmatpush1.bf16.msra.mxu0 %v297
    %346 = vmatprep.mubr.bf16.mxu0 %v181
    %347 = vmatmul.mubr.bf16.gmra.mrb[0].mxu0 %v180
    %v348 = vpop.f32.mrb[0].mxu0
    %v349 = vadd.f32 %v217, %v348
    %v350 = vpop.f32.mrb[0].mxu0
    %v351 = vpop.f32.mrb[0].mxu0
    %v352 = vpop.f32.mrb[0].mxu0
    %353 = vdwg.mxu0
    %v354 = vmax.f32 %v349, 0.0
    %v355 = vld [vmem:[%s2] sm:$0xf]
    %v356 = vld [vmem:[%s2 + $0x4] sm:$0xf]
    %v357 = vld [vmem:[%s2 + $0x8] sm:$0xf]
    %v358 = vld [vmem:[%s2 + $0xc] sm:$0xf]
    %v359 = vld [vmem:[%s2 + $0x10] sm:$0xf]
    %v360 = vld [vmem:[%s2 + $0x14] sm:$0xf]
    %v361 = vld [vmem:[%s2 + $0x18] sm:$0xf]
    %v362 = vld [vmem:[%s2 + $0x1c] sm:$0xf]
    %v363 = vld [vmem:[%s2 + $0x20] sm:$0xf]
    %v364 = vld [vmem:[%s2 + $0x24] sm:$0xf]
    %v365 = vld [vmem:[%s2 + $0x28] sm:$0xf]
    %v366 = vld [vmem:[%s2 + $0x2c] sm:$0xf]
    %v367 = vld [vmem:[%s2 + $0x30] sm:$0xf]
    %v368 = vld [vmem:[%s2 + $0x34] sm:$0xf]
    %v369 = vld [vmem:[%s2 + $0x38] sm:$0xf]
    %v370 = vld [vmem:[%s2 + $0x3c] sm:$0xf]
    %v371 = vld [vmem:[%s2 + $0x40] sm:$0xf]
    %v372 = vld [vmem:[%s2 + $0x44] sm:$0xf]
    %v373 = vld [vmem:[%s2 + $0x48] sm:$0xf]
    %v374 = vld [vmem:[%s2 + $0x4c] sm:$0xf]
    %v375 = vld [vmem:[%s2 + $0x50] sm:$0xf]
    %v376 = vld [vmem:[%s2 + $0x54] sm:$0xf]
    %v377 = vld [vmem:[%s2 + $0x58] sm:$0xf]
    %v378 = vld [vmem:[%s2 + $0x5c] sm:$0xf]
    %v379 = vld [vmem:[%s2 + $0x60] sm:$0xf]
    %v380 = vld [vmem:[%s2 + $0x64] sm:$0xf]
    %v381 = vld [vmem:[%s2 + $0x68] sm:$0xf]
    %v382 = vld [vmem:[%s2 + $0x6c] sm:$0xf]
    %v383 = vld [vmem:[%s2 + $0x70] sm:$0xf]
    %v384 = vld [vmem:[%s2 + $0x74] sm:$0xf]
    %v385 = vld [vmem:[%s2 + $0x78] sm:$0xf]
    %v386 = vld [vmem:[%s2 + $0x7c] sm:$0xf]
    %v387 = vld [vmem:[%s2 + $0x80] sm:$0xf]
    %v388 = vld [vmem:[%s2 + $0x84] sm:$0xf]
    %v389 = vld [vmem:[%s2 + $0x88] sm:$0xf]
    %v390 = vld [vmem:[%s2 + $0x8c] sm:$0xf]
    %v391 = vld [vmem:[%s2 + $0x90] sm:$0xf]
    %v392 = vld [vmem:[%s2 + $0x94] sm:$0xf]
    %v393 = vld [vmem:[%s2 + $0x98] sm:$0xf]
    %v394 = vld [vmem:[%s2 + $0x9c] sm:$0xf]
    %v395 = vld [vmem:[%s2 + $0xa0] sm:$0xf]
    %v396 = vld [vmem:[%s2 + $0xa4] sm:$0xf]
    %v397 = vld [vmem:[%s2 + $0xa8] sm:$0xf]
    %v398 = vld [vmem:[%s2 + $0xac] sm:$0xf]
    %v399 = vld [vmem:[%s2 + $0xb0] sm:$0xf]
    %v400 = vld [vmem:[%s2 + $0xb4] sm:$0xf]
    %v401 = vld [vmem:[%s2 + $0xb8] sm:$0xf]
    %v402 = vld [vmem:[%s2 + $0xbc] sm:$0xf]
    %v403 = vld [vmem:[%s2 + $0xc0] sm:$0xf]
    %v404 = vld [vmem:[%s2 + $0xc4] sm:$0xf]
    %v405 = vld [vmem:[%s2 + $0xc8] sm:$0xf]
    %v406 = vld [vmem:[%s2 + $0xcc] sm:$0xf]
    %v407 = vld [vmem:[%s2 + $0xd0] sm:$0xf]
    %v408 = vld [vmem:[%s2 + $0xd4] sm:$0xf]
    %v409 = vld [vmem:[%s2 + $0xd8] sm:$0xf]
    %v410 = vld [vmem:[%s2 + $0xdc] sm:$0xf]
    %v411 = vld [vmem:[%s2 + $0xe0] sm:$0xf]
    %v412 = vld [vmem:[%s2 + $0xe4] sm:$0xf]
    %v413 = vld [vmem:[%s2 + $0xe8] sm:$0xf]
    %v414 = vld [vmem:[%s2 + $0xec] sm:$0xf]
    %v415 = vld [vmem:[%s2 + $0xf0] sm:$0xf]
    %v416 = vld [vmem:[%s2 + $0xf4] sm:$0xf]
    %v417 = vld [vmem:[%s2 + $0xf8] sm:$0xf]
    %v418 = vld [vmem:[%s2 + $0xfc] sm:$0xf]
    %v419 = vld [vmem:[%s2 + $0x100] sm:$0xf]
    %v420 = vld [vmem:[%s2 + $0x104] sm:$0xf]
    %v421 = vld [vmem:[%s2 + $0x108] sm:$0xf]
    %v422 = vld [vmem:[%s2 + $0x10c] sm:$0xf]
    %v423 = vld [vmem:[%s2 + $0x110] sm:$0xf]
    %v424 = vld [vmem:[%s2 + $0x114] sm:$0xf]
    %v425 = vld [vmem:[%s2 + $0x118] sm:$0xf]
    %v426 = vld [vmem:[%s2 + $0x11c] sm:$0xf]
    %v427 = vld [vmem:[%s2 + $0x120] sm:$0xf]
    %v428 = vld [vmem:[%s2 + $0x124] sm:$0xf]
    %v429 = vld [vmem:[%s2 + $0x128] sm:$0xf]
    %v430 = vld [vmem:[%s2 + $0x12c] sm:$0xf]
    %v431 = vld [vmem:[%s2 + $0x130] sm:$0xf]
    %v432 = vld [vmem:[%s2 + $0x134] sm:$0xf]
    %v433 = vld [vmem:[%s2 + $0x138] sm:$0xf]
    %v434 = vld [vmem:[%s2 + $0x13c] sm:$0xf]
    %v435 = vld [vmem:[%s2 + $0x140] sm:$0xf]
    %v436 = vld [vmem:[%s2 + $0x144] sm:$0xf]
    %v437 = vld [vmem:[%s2 + $0x148] sm:$0xf]
    %v438 = vld [vmem:[%s2 + $0x14c] sm:$0xf]
    %v439 = vld [vmem:[%s2 + $0x150] sm:$0xf]
    %v440 = vld [vmem:[%s2 + $0x154] sm:$0xf]
    %v441 = vld [vmem:[%s2 + $0x158] sm:$0xf]
    %v442 = vld [vmem:[%s2 + $0x15c] sm:$0xf]
    %v443 = vld [vmem:[%s2 + $0x160] sm:$0xf]
    %v444 = vld [vmem:[%s2 + $0x164] sm:$0xf]
    %v445 = vld [vmem:[%s2 + $0x168] sm:$0xf]
    %v446 = vld [vmem:[%s2 + $0x16c] sm:$0xf]
    %v447 = vld [vmem:[%s2 + $0x170] sm:$0xf]
    %v448 = vld [vmem:[%s2 + $0x174] sm:$0xf]
    %v449 = vld [vmem:[%s2 + $0x178] sm:$0xf]
    %v450 = vld [vmem:[%s2 + $0x17c] sm:$0xf]
    %v451 = vld [vmem:[%s2 + $0x180] sm:$0xf]
    %v452 = vld [vmem:[%s2 + $0x184] sm:$0xf]
    %v453 = vld [vmem:[%s2 + $0x188] sm:$0xf]
    %v454 = vld [vmem:[%s2 + $0x18c] sm:$0xf]
    %v455 = vld [vmem:[%s2 + $0x190] sm:$0xf]
    %v456 = vld [vmem:[%s2 + $0x194] sm:$0xf]
    %v457 = vld [vmem:[%s2 + $0x198] sm:$0xf]
    %v458 = vld [vmem:[%s2 + $0x19c] sm:$0xf]
    %v459 = vld [vmem:[%s2 + $0x1a0] sm:$0xf]
    %v460 = vld [vmem:[%s2 + $0x1a4] sm:$0xf]
    %v461 = vld [vmem:[%s2 + $0x1a8] sm:$0xf]
    %v462 = vld [vmem:[%s2 + $0x1ac] sm:$0xf]
    %v463 = vld [vmem:[%s2 + $0x1b0] sm:$0xf]
    %v464 = vld [vmem:[%s2 + $0x1b4] sm:$0xf]
    %v465 = vld [vmem:[%s2 + $0x1b8] sm:$0xf]
    %v466 = vld [vmem:[%s2 + $0x1bc] sm:$0xf]
    %v467 = vld [vmem:[%s2 + $0x1c0] sm:$0xf]
    %v468 = vld [vmem:[%s2 + $0x1c4] sm:$0xf]
    %v469 = vld [vmem:[%s2 + $0x1c8] sm:$0xf]
    %v470 = vld [vmem:[%s2 + $0x1cc] sm:$0xf]
    %v471 = vld [vmem:[%s2 + $0x1d0] sm:$0xf]
    %v472 = vld [vmem:[%s2 + $0x1d4] sm:$0xf]
    %v473 = vld [vmem:[%s2 + $0x1d8] sm:$0xf]
    %v474 = vld [vmem:[%s2 + $0x1dc] sm:$0xf]
    %v475 = vld [vmem:[%s2 + $0x1e0] sm:$0xf]
    %v476 = vld [vmem:[%s2 + $0x1e4] sm:$0xf]
    %v477 = vld [vmem:[%s2 + $0x1e8] sm:$0xf]
    %v478 = vld [vmem:[%s2 + $0x1ec] sm:$0xf]
    %v479 = vld [vmem:[%s2 + $0x1f0] sm:$0xf]
    %v480 = vld [vmem:[%s2 + $0x1f4] sm:$0xf]
    %v481 = vld [vmem:[%s2 + $0x1f8] sm:$0xf]
    %v482 = vld [vmem:[%s2 + $0x1fc] sm:$0xf]
    %v483 = vld [vmem:[%s2 + $0x200] sm:$0xf]
    %v484 = vld [vmem:[%s2 + $0x204] sm:$0xf]
    %v485 = vld [vmem:[%s2 + $0x208] sm:$0xf]
    %v486 = vld [vmem:[%s2 + $0x20c] sm:$0xf]
    %v487 = vld [vmem:[%s2 + $0x210] sm:$0xf]
    %v488 = vld [vmem:[%s2 + $0x214] sm:$0xf]
    %v489 = vld [vmem:[%s2 + $0x218] sm:$0xf]
    %v490 = vld [vmem:[%s2 + $0x21c] sm:$0xf]
    %v491 = vld [vmem:[%s2 + $0x220] sm:$0xf]
    %v492 = vld [vmem:[%s2 + $0x224] sm:$0xf]
    %v493 = vld [vmem:[%s2 + $0x228] sm:$0xf]
    %v494 = vld [vmem:[%s2 + $0x22c] sm:$0xf]
    %v495 = vld [vmem:[%s2 + $0x230] sm:$0xf]
    %v496 = vld [vmem:[%s2 + $0x234] sm:$0xf]
    %v497 = vld [vmem:[%s2 + $0x238] sm:$0xf]
    %v498 = vld [vmem:[%s2 + $0x23c] sm:$0xf]
    %v499 = vld [vmem:[%s0] sm:$0xff]
    %v500 = vld [vmem:[%s0 + $0x8] sm:$0xff]
    %v503 = vcombine.high %v499, %v499
    %v505 = vunpack.c.l.s4 1983009808
    %v506 = vunpack.c.0.s8 %v505
    %v507 = vlaneseq
    %v508 = vshrl.u32 %v507, 7
    %v509 = vsub.s32 %v506, %v508
    %v510 = vrot.slane %v499, %v509
    %v512 = vunpack.c.l.s4 1983009808
    %v513 = vunpack.c.0.s8 %v512
    %v514 = vlaneseq
    %v515 = vshrl.u32 %v514, 7
    %v516 = vsub.s32 %v513, %v515
    %v517 = vrot.slane %v503, %v516
    %v518 = vcombine.high %v510, %v510
    %v519 = vcombine.high %v517, %v517
    %v520 = vcombine.high %v500, %v500
    %v522 = vunpack.c.l.s4 1983009808
    %v523 = vunpack.c.0.s8 %v522
    %v524 = vlaneseq
    %v525 = vshrl.u32 %v524, 7
    %v526 = vsub.s32 %v523, %v525
    %v527 = vrot.slane %v500, %v526
    %v529 = vunpack.c.l.s4 1983009808
    %v530 = vunpack.c.0.s8 %v529
    %v531 = vlaneseq
    %v532 = vshrl.u32 %v531, 7
    %v533 = vsub.s32 %v530, %v532
    %v534 = vrot.slane %v520, %v533
    %v535 = vcombine.high %v527, %v527
    %v536 = vcombine.high %v534, %v534
    %v545 = vpack.c.bf16 %v510, %v510
    %v546 = vpack.c.bf16 %v518, %v518
    %v547 = vpack.c.bf16 %v517, %v517
    %v548 = vpack.c.bf16 %v519, %v519
    %v549 = vpack.c.bf16 %v527, %v527
    %v550 = vpack.c.bf16 %v535, %v535
    %v551 = vpack.c.bf16 %v534, %v534
    %v552 = vpack.c.bf16 %v536, %v536
    %v553 = vpack.c.bf16 %v354, %v354
    %v570 = vunpack.c.l.b16 %v483
    %v571 = vunpack.c.l.b16 %v484
    %v572 = vunpack.c.l.b16 %v485
    %v573 = vunpack.c.l.b16 %v486
    %v574 = vunpack.c.l.b16 %v487
    %v575 = vunpack.c.l.b16 %v488
    %v576 = vunpack.c.l.b16 %v489
    %v577 = vunpack.c.l.b16 %v490
    %v578 = vunpack.c.l.b16 %v491
    %v579 = vunpack.c.l.b16 %v492
    %v580 = vunpack.c.l.b16 %v493
    %v581 = vunpack.c.l.b16 %v494
    %v582 = vunpack.c.l.b16 %v495
    %v583 = vunpack.c.l.b16 %v496
    %v584 = vunpack.c.l.b16 %v497
    %v585 = vunpack.c.l.b16 %v498
    %v586 = vpack.c.b16 %v571, %v570
    %v587 = vpack.c.b16 %v573, %v572
    %v588 = vpack.c.b16 %v575, %v574
    %v589 = vpack.c.b16 %v577, %v576
    %v590 = vpack.c.b16 %v579, %v578
    %v591 = vpack.c.b16 %v581, %v580
    %v592 = vpack.c.b16 %v583, %v582
    %v593 = vpack.c.b16 %v585, %v584
    %602 = vmatprep.subr.bf16.mxu0 0
    %603 = vmatpush1.bf16.msra.mxu0 %v586
    %604 = vmatprep.subr.bf16.mxu0 0
    %605 = vmatpush1.bf16.msra.mxu0 %v587
    %606 = vmatprep.subr.bf16.mxu0 0
    %607 = vmatpush1.bf16.msra.mxu0 %v588
    %608 = vmatprep.subr.bf16.mxu0 0
    %609 = vmatpush1.bf16.msra.mxu0 %v589
    %610 = vmatprep.subr.bf16.mxu0 0
    %611 = vmatpush1.bf16.msra.mxu0 %v590
    %612 = vmatprep.subr.bf16.mxu0 0
    %613 = vmatpush1.bf16.msra.mxu0 %v591
    %614 = vmatprep.subr.bf16.mxu0 0
    %615 = vmatpush1.bf16.msra.mxu0 %v592
    %616 = vmatprep.subr.bf16.mxu0 0
    %617 = vmatpush1.bf16.msra.mxu0 %v593
    %618 = vmatprep.subr.bf16.mxu0 0
    %619 = vmatpush1.bf16.msra.mxu0 0
    %620 = vmatprep.subr.bf16.mxu0 0
    %621 = vmatpush1.bf16.msra.mxu0 0
    %622 = vmatprep.subr.bf16.mxu0 0
    %623 = vmatpush1.bf16.msra.mxu0 0
    %624 = vmatprep.subr.bf16.mxu0 0
    %625 = vmatpush1.bf16.msra.mxu0 0
    %626 = vmatprep.subr.bf16.mxu0 0
    %627 = vmatpush1.bf16.msra.mxu0 0
    %628 = vmatprep.subr.bf16.mxu0 0
    %629 = vmatpush1.bf16.msra.mxu0 0
    %630 = vmatprep.subr.bf16.mxu0 0
    %631 = vmatpush1.bf16.msra.mxu0 0
    %632 = vmatprep.subr.bf16.mxu0 0
    %633 = vmatpush1.bf16.msra.mxu0 0
    %634 = vmatprep.mubr.bf16.mxu0 0
    %635 = vmatmul.mubr.bf16.gmra.mrb[0].mxu0 %v553
    %v636 = vpop.f32.mrb[0].mxu0
    %v637 = vadd.f32 0.0, %v636
    %v638 = vpop.f32.mrb[0].mxu0
    %v639 = vpop.f32.mrb[0].mxu0
    %v640 = vpop.f32.mrb[0].mxu0
    %641 = vdwg.mxu0
    %v770 = vunpack.c.l.b16 %v355
    %v771 = vunpack.c.l.b16 %v356
    %v772 = vunpack.c.l.b16 %v357
    %v773 = vunpack.c.l.b16 %v358
    %v774 = vunpack.c.l.b16 %v359
    %v775 = vunpack.c.l.b16 %v360
    %v776 = vunpack.c.l.b16 %v361
    %v777 = vunpack.c.l.b16 %v362
    %v778 = vunpack.c.l.b16 %v363
    %v779 = vunpack.c.l.b16 %v364
    %v780 = vunpack.c.l.b16 %v365
    %v781 = vunpack.c.l.b16 %v366
    %v782 = vunpack.c.l.b16 %v367
    %v783 = vunpack.c.l.b16 %v368
    %v784 = vunpack.c.l.b16 %v369
    %v785 = vunpack.c.l.b16 %v370
    %v786 = vunpack.c.l.b16 %v371
    %v787 = vunpack.c.l.b16 %v372
    %v788 = vunpack.c.l.b16 %v373
    %v789 = vunpack.c.l.b16 %v374
    %v790 = vunpack.c.l.b16 %v375
    %v791 = vunpack.c.l.b16 %v376
    %v792 = vunpack.c.l.b16 %v377
    %v793 = vunpack.c.l.b16 %v378
    %v794 = vunpack.c.l.b16 %v379
    %v795 = vunpack.c.l.b16 %v380
    %v796 = vunpack.c.l.b16 %v381
    %v797 = vunpack.c.l.b16 %v382
    %v798 = vunpack.c.l.b16 %v383
    %v799 = vunpack.c.l.b16 %v384
    %v800 = vunpack.c.l.b16 %v385
    %v801 = vunpack.c.l.b16 %v386
    %v802 = vunpack.c.l.b16 %v387
    %v803 = vunpack.c.l.b16 %v388
    %v804 = vunpack.c.l.b16 %v389
    %v805 = vunpack.c.l.b16 %v390
    %v806 = vunpack.c.l.b16 %v391
    %v807 = vunpack.c.l.b16 %v392
    %v808 = vunpack.c.l.b16 %v393
    %v809 = vunpack.c.l.b16 %v394
    %v810 = vunpack.c.l.b16 %v395
    %v811 = vunpack.c.l.b16 %v396
    %v812 = vunpack.c.l.b16 %v397
    %v813 = vunpack.c.l.b16 %v398
    %v814 = vunpack.c.l.b16 %v399
    %v815 = vunpack.c.l.b16 %v400
    %v816 = vunpack.c.l.b16 %v401
    %v817 = vunpack.c.l.b16 %v402
    %v818 = vunpack.c.l.b16 %v403
    %v819 = vunpack.c.l.b16 %v404
    %v820 = vunpack.c.l.b16 %v405
    %v821 = vunpack.c.l.b16 %v406
    %v822 = vunpack.c.l.b16 %v407
    %v823 = vunpack.c.l.b16 %v408
    %v824 = vunpack.c.l.b16 %v409
    %v825 = vunpack.c.l.b16 %v410
    %v826 = vunpack.c.l.b16 %v411
    %v827 = vunpack.c.l.b16 %v412
    %v828 = vunpack.c.l.b16 %v413
    %v829 = vunpack.c.l.b16 %v414
    %v830 = vunpack.c.l.b16 %v415
    %v831 = vunpack.c.l.b16 %v416
    %v832 = vunpack.c.l.b16 %v417
    %v833 = vunpack.c.l.b16 %v418
    %v834 = vunpack.c.l.b16 %v419
    %v835 = vunpack.c.l.b16 %v420
    %v836 = vunpack.c.l.b16 %v421
    %v837 = vunpack.c.l.b16 %v422
    %v838 = vunpack.c.l.b16 %v423
    %v839 = vunpack.c.l.b16 %v424
    %v840 = vunpack.c.l.b16 %v425
    %v841 = vunpack.c.l.b16 %v426
    %v842 = vunpack.c.l.b16 %v427
    %v843 = vunpack.c.l.b16 %v428
    %v844 = vunpack.c.l.b16 %v429
    %v845 = vunpack.c.l.b16 %v430
    %v846 = vunpack.c.l.b16 %v431
    %v847 = vunpack.c.l.b16 %v432
    %v848 = vunpack.c.l.b16 %v433
    %v849 = vunpack.c.l.b16 %v434
    %v850 = vunpack.c.l.b16 %v435
    %v851 = vunpack.c.l.b16 %v436
    %v852 = vunpack.c.l.b16 %v437
    %v853 = vunpack.c.l.b16 %v438
    %v854 = vunpack.c.l.b16 %v439
    %v855 = vunpack.c.l.b16 %v440
    %v856 = vunpack.c.l.b16 %v441
    %v857 = vunpack.c.l.b16 %v442
    %v858 = vunpack.c.l.b16 %v443
    %v859 = vunpack.c.l.b16 %v444
    %v860 = vunpack.c.l.b16 %v445
    %v861 = vunpack.c.l.b16 %v446
    %v862 = vunpack.c.l.b16 %v447
    %v863 = vunpack.c.l.b16 %v448
    %v864 = vunpack.c.l.b16 %v449
    %v865 = vunpack.c.l.b16 %v450
    %v866 = vunpack.c.l.b16 %v451
    %v867 = vunpack.c.l.b16 %v452
    %v868 = vunpack.c.l.b16 %v453
    %v869 = vunpack.c.l.b16 %v454
    %v870 = vunpack.c.l.b16 %v455
    %v871 = vunpack.c.l.b16 %v456
    %v872 = vunpack.c.l.b16 %v457
    %v873 = vunpack.c.l.b16 %v458
    %v874 = vunpack.c.l.b16 %v459
    %v875 = vunpack.c.l.b16 %v460
    %v876 = vunpack.c.l.b16 %v461
    %v877 = vunpack.c.l.b16 %v462
    %v878 = vunpack.c.l.b16 %v463
    %v879 = vunpack.c.l.b16 %v464
    %v880 = vunpack.c.l.b16 %v465
    %v881 = vunpack.c.l.b16 %v466
    %v882 = vunpack.c.l.b16 %v467
    %v883 = vunpack.c.l.b16 %v468
    %v884 = vunpack.c.l.b16 %v469
    %v885 = vunpack.c.l.b16 %v470
    %v886 = vunpack.c.l.b16 %v471
    %v887 = vunpack.c.l.b16 %v472
    %v888 = vunpack.c.l.b16 %v473
    %v889 = vunpack.c.l.b16 %v474
    %v890 = vunpack.c.l.b16 %v475
    %v891 = vunpack.c.l.b16 %v476
    %v892 = vunpack.c.l.b16 %v477
    %v893 = vunpack.c.l.b16 %v478
    %v894 = vunpack.c.l.b16 %v479
    %v895 = vunpack.c.l.b16 %v480
    %v896 = vunpack.c.l.b16 %v481
    %v897 = vunpack.c.l.b16 %v482
    %v898 = vpack.c.b16 %v771, %v770
    %v899 = vpack.c.b16 %v773, %v772
    %v900 = vpack.c.b16 %v775, %v774
    %v901 = vpack.c.b16 %v777, %v776
    %v902 = vpack.c.b16 %v779, %v778
    %v903 = vpack.c.b16 %v781, %v780
    %v904 = vpack.c.b16 %v783, %v782
    %v905 = vpack.c.b16 %v785, %v784
    %v906 = vpack.c.b16 %v787, %v786
    %v907 = vpack.c.b16 %v789, %v788
    %v908 = vpack.c.b16 %v791, %v790
    %v909 = vpack.c.b16 %v793, %v792
    %v910 = vpack.c.b16 %v795, %v794
    %v911 = vpack.c.b16 %v797, %v796
    %v912 = vpack.c.b16 %v799, %v798
    %v913 = vpack.c.b16 %v801, %v800
    %v914 = vpack.c.b16 %v803, %v802
    %v915 = vpack.c.b16 %v805, %v804
    %v916 = vpack.c.b16 %v807, %v806
    %v917 = vpack.c.b16 %v809, %v808
    %v918 = vpack.c.b16 %v811, %v810
    %v919 = vpack.c.b16 %v813, %v812
    %v920 = vpack.c.b16 %v815, %v814
    %v921 = vpack.c.b16 %v817, %v816
    %v922 = vpack.c.b16 %v819, %v818
    %v923 = vpack.c.b16 %v821, %v820
    %v924 = vpack.c.b16 %v823, %v822
    %v925 = vpack.c.b16 %v825, %v824
    %v926 = vpack.c.b16 %v827, %v826
    %v927 = vpack.c.b16 %v829, %v828
    %v928 = vpack.c.b16 %v831, %v830
    %v929 = vpack.c.b16 %v833, %v832
    %v930 = vpack.c.b16 %v835, %v834
    %v931 = vpack.c.b16 %v837, %v836
    %v932 = vpack.c.b16 %v839, %v838
    %v933 = vpack.c.b16 %v841, %v840
    %v934 = vpack.c.b16 %v843, %v842
    %v935 = vpack.c.b16 %v845, %v844
    %v936 = vpack.c.b16 %v847, %v846
    %v937 = vpack.c.b16 %v849, %v848
    %v938 = vpack.c.b16 %v851, %v850
    %v939 = vpack.c.b16 %v853, %v852
    %v940 = vpack.c.b16 %v855, %v854
    %v941 = vpack.c.b16 %v857, %v856
    %v942 = vpack.c.b16 %v859, %v858
    %v943 = vpack.c.b16 %v861, %v860
    %v944 = vpack.c.b16 %v863, %v862
    %v945 = vpack.c.b16 %v865, %v864
    %v946 = vpack.c.b16 %v867, %v866
    %v947 = vpack.c.b16 %v869, %v868
    %v948 = vpack.c.b16 %v871, %v870
    %v949 = vpack.c.b16 %v873, %v872
    %v950 = vpack.c.b16 %v875, %v874
    %v951 = vpack.c.b16 %v877, %v876
    %v952 = vpack.c.b16 %v879, %v878
    %v953 = vpack.c.b16 %v881, %v880
    %v954 = vpack.c.b16 %v883, %v882
    %v955 = vpack.c.b16 %v885, %v884
    %v956 = vpack.c.b16 %v887, %v886
    %v957 = vpack.c.b16 %v889, %v888
    %v958 = vpack.c.b16 %v891, %v890
    %v959 = vpack.c.b16 %v893, %v892
    %v960 = vpack.c.b16 %v895, %v894
    %v961 = vpack.c.b16 %v897, %v896
    %1026 = vmatprep.subr.bf16.mxu0 0
    %1027 = vmatpush1.bf16.msra.mxu0 %v898
    %1028 = vmatprep.subr.bf16.mxu0 0
    %1029 = vmatpush1.bf16.msra.mxu0 %v899
    %1030 = vmatprep.subr.bf16.mxu0 0
    %1031 = vmatpush1.bf16.msra.mxu0 %v900
    %1032 = vmatprep.subr.bf16.mxu0 0
    %1033 = vmatpush1.bf16.msra.mxu0 %v901
    %1034 = vmatprep.subr.bf16.mxu0 0
    %1035 = vmatpush1.bf16.msra.mxu0 %v902
    %1036 = vmatprep.subr.bf16.mxu0 0
    %1037 = vmatpush1.bf16.msra.mxu0 %v903
    %1038 = vmatprep.subr.bf16.mxu0 0
    %1039 = vmatpush1.bf16.msra.mxu0 %v904
    %1040 = vmatprep.subr.bf16.mxu0 0
    %1041 = vmatpush1.bf16.msra.mxu0 %v905
    %1042 = vmatprep.subr.bf16.mxu0 0
    %1043 = vmatpush1.bf16.msra.mxu0 %v906
    %1044 = vmatprep.subr.bf16.mxu0 0
    %1045 = vmatpush1.bf16.msra.mxu0 %v907
    %1046 = vmatprep.subr.bf16.mxu0 0
    %1047 = vmatpush1.bf16.msra.mxu0 %v908
    %1048 = vmatprep.subr.bf16.mxu0 0
    %1049 = vmatpush1.bf16.msra.mxu0 %v909
    %1050 = vmatprep.subr.bf16.mxu0 0
    %1051 = vmatpush1.bf16.msra.mxu0 %v910
    %1052 = vmatprep.subr.bf16.mxu0 0
    %1053 = vmatpush1.bf16.msra.mxu0 %v911
    %1054 = vmatprep.subr.bf16.mxu0 0
    %1055 = vmatpush1.bf16.msra.mxu0 %v912
    %1056 = vmatprep.subr.bf16.mxu0 0
    %1057 = vmatpush1.bf16.msra.mxu0 %v913
    %1058 = vmatprep.mubr.bf16.mxu0 %v546
    %1059 = vmatmul.mubr.bf16.gmra.mrb[0].mxu0 %v545
    %v1060 = vpop.f32.mrb[0].mxu0
    %v1061 = vadd.f32 %v637, %v1060
    %v1062 = vpop.f32.mrb[0].mxu0
    %v1063 = vpop.f32.mrb[0].mxu0
    %v1064 = vpop.f32.mrb[0].mxu0
    %1065 = vdwg.mxu0
    %1066 = vmatprep.subr.bf16.mxu0 0
    %1067 = vmatpush1.bf16.msra.mxu0 %v914
    %1068 = vmatprep.subr.bf16.mxu0 0
    %1069 = vmatpush1.bf16.msra.mxu0 %v915
    %1070 = vmatprep.subr.bf16.mxu0 0
    %1071 = vmatpush1.bf16.msra.mxu0 %v916
    %1072 = vmatprep.subr.bf16.mxu0 0
    %1073 = vmatpush1.bf16.msra.mxu0 %v917
    %1074 = vmatprep.subr.bf16.mxu0 0
    %1075 = vmatpush1.bf16.msra.mxu0 %v918
    %1076 = vmatprep.subr.bf16.mxu0 0
    %1077 = vmatpush1.bf16.msra.mxu0 %v919
    %1078 = vmatprep.subr.bf16.mxu0 0
    %1079 = vmatpush1.bf16.msra.mxu0 %v920
    %1080 = vmatprep.subr.bf16.mxu0 0
    %1081 = vmatpush1.bf16.msra.mxu0 %v921
    %1082 = vmatprep.subr.bf16.mxu0 0
    %1083 = vmatpush1.bf16.msra.mxu0 %v922
    %1084 = vmatprep.subr.bf16.mxu0 0
    %1085 = vmatpush1.bf16.msra.mxu0 %v923
    %1086 = vmatprep.subr.bf16.mxu0 0
    %1087 = vmatpush1.bf16.msra.mxu0 %v924
    %1088 = vmatprep.subr.bf16.mxu0 0
    %1089 = vmatpush1.bf16.msra.mxu0 %v925
    %1090 = vmatprep.subr.bf16.mxu0 0
    %1091 = vmatpush1.bf16.msra.mxu0 %v926
    %1092 = vmatprep.subr.bf16.mxu0 0
    %1093 = vmatpush1.bf16.msra.mxu0 %v927
    %1094 = vmatprep.subr.bf16.mxu0 0
    %1095 = vmatpush1.bf16.msra.mxu0 %v928
    %1096 = vmatprep.subr.bf16.mxu0 0
    %1097 = vmatpush1.bf16.msra.mxu0 %v929
    %1098 = vmatprep.mubr.bf16.mxu0 %v548
    %1099 = vmatmul.mubr.bf16.gmra.mrb[0].mxu0 %v547
    %v1100 = vpop.f32.mrb[0].mxu0
    %v1101 = vadd.f32 %v1061, %v1100
    %v1102 = vpop.f32.mrb[0].mxu0
    %v1103 = vpop.f32.mrb[0].mxu0
    %v1104 = vpop.f32.mrb[0].mxu0
    %1105 = vdwg.mxu0
    %1106 = vmatprep.subr.bf16.mxu0 0
    %1107 = vmatpush1.bf16.msra.mxu0 %v930
    %1108 = vmatprep.subr.bf16.mxu0 0
    %1109 = vmatpush1.bf16.msra.mxu0 %v931
    %1110 = vmatprep.subr.bf16.mxu0 0
    %1111 = vmatpush1.bf16.msra.mxu0 %v932
    %1112 = vmatprep.subr.bf16.mxu0 0
    %1113 = vmatpush1.bf16.msra.mxu0 %v933
    %1114 = vmatprep.subr.bf16.mxu0 0
    %1115 = vmatpush1.bf16.msra.mxu0 %v934
    %1116 = vmatprep.subr.bf16.mxu0 0
    %1117 = vmatpush1.bf16.msra.mxu0 %v935
    %1118 = vmatprep.subr.bf16.mxu0 0
    %1119 = vmatpush1.bf16.msra.mxu0 %v936
    %1120 = vmatprep.subr.bf16.mxu0 0
    %1121 = vmatpush1.bf16.msra.mxu0 %v937
    %1122 = vmatprep.subr.bf16.mxu0 0
    %1123 = vmatpush1.bf16.msra.mxu0 %v938
    %1124 = vmatprep.subr.bf16.mxu0 0
    %1125 = vmatpush1.bf16.msra.mxu0 %v939
    %1126 = vmatprep.subr.bf16.mxu0 0
    %1127 = vmatpush1.bf16.msra.mxu0 %v940
    %1128 = vmatprep.subr.bf16.mxu0 0
    %1129 = vmatpush1.bf16.msra.mxu0 %v941
    %1130 = vmatprep.subr.bf16.mxu0 0
    %1131 = vmatpush1.bf16.msra.mxu0 %v942
    %1132 = vmatprep.subr.bf16.mxu0 0
    %1133 = vmatpush1.bf16.msra.mxu0 %v943
    %1134 = vmatprep.subr.bf16.mxu0 0
    %1135 = vmatpush1.bf16.msra.mxu0 %v944
    %1136 = vmatprep.subr.bf16.mxu0 0
    %1137 = vmatpush1.bf16.msra.mxu0 %v945
    %1138 = vmatprep.mubr.bf16.mxu0 %v550
    %1139 = vmatmul.mubr.bf16.gmra.mrb[0].mxu0 %v549
    %v1140 = vpop.f32.mrb[0].mxu0
    %v1141 = vadd.f32 %v1101, %v1140
    %v1142 = vpop.f32.mrb[0].mxu0
    %v1143 = vpop.f32.mrb[0].mxu0
    %v1144 = vpop.f32.mrb[0].mxu0
    %1145 = vdwg.mxu0
    %1146 = vmatprep.subr.bf16.mxu0 0
    %1147 = vmatpush1.bf16.msra.mxu0 %v946
    %1148 = vmatprep.subr.bf16.mxu0 0
    %1149 = vmatpush1.bf16.msra.mxu0 %v947
    %1150 = vmatprep.subr.bf16.mxu0 0
    %1151 = vmatpush1.bf16.msra.mxu0 %v948
    %1152 = vmatprep.subr.bf16.mxu0 0
    %1153 = vmatpush1.bf16.msra.mxu0 %v949
    %1154 = vmatprep.subr.bf16.mxu0 0
    %1155 = vmatpush1.bf16.msra.mxu0 %v950
    %1156 = vmatprep.subr.bf16.mxu0 0
    %1157 = vmatpush1.bf16.msra.mxu0 %v951
    %1158 = vmatprep.subr.bf16.mxu0 0
    %1159 = vmatpush1.bf16.msra.mxu0 %v952
    %1160 = vmatprep.subr.bf16.mxu0 0
    %1161 = vmatpush1.bf16.msra.mxu0 %v953
    %1162 = vmatprep.subr.bf16.mxu0 0
    %1163 = vmatpush1.bf16.msra.mxu0 %v954
    %1164 = vmatprep.subr.bf16.mxu0 0
    %1165 = vmatpush1.bf16.msra.mxu0 %v955
    %1166 = vmatprep.subr.bf16.mxu0 0
    %1167 = vmatpush1.bf16.msra.mxu0 %v956
    %1168 = vmatprep.subr.bf16.mxu0 0
    %1169 = vmatpush1.bf16.msra.mxu0 %v957
    %1170 = vmatprep.subr.bf16.mxu0 0
    %1171 = vmatpush1.bf16.msra.mxu0 %v958
    %1172 = vmatprep.subr.bf16.mxu0 0
    %1173 = vmatpush1.bf16.msra.mxu0 %v959
    %1174 = vmatprep.subr.bf16.mxu0 0
    %1175 = vmatpush1.bf16.msra.mxu0 %v960
    %1176 = vmatprep.subr.bf16.mxu0 0
    %1177 = vmatpush1.bf16.msra.mxu0 %v961
    %1178 = vmatprep.mubr.bf16.mxu0 %v552
    %1179 = vmatmul.mubr.bf16.gmra.mrb[0].mxu0 %v551
    %v1180 = vpop.f32.mrb[0].mxu0
    %v1181 = vadd.f32 %v1141, %v1180
    %v1182 = vpop.f32.mrb[0].mxu0
    %v1183 = vpop.f32.mrb[0].mxu0
    %v1184 = vpop.f32.mrb[0].mxu0
    %1185 = vdwg.mxu0
    %v1186 = vlaneseq
    %v1187 = vshrl.u32 %v1186, 7
    %v1188 = vsub.s32 0, %v1187
    %v1189 = vrot.slane %v27, %v1188
    %v1190 = vadd.f32 %v1181, %v1189
    %vm1191 = vcmask 41984
    %1192 = vst.msk [vmem:[#allocation2] sm:$0x3] %vm1191, %v1190
    // Predicated region
    $region26: #{tpu_custom_call.1} parent=1 // pred_check
      _
    $region27: #{tpu_custom_call.1} parent=1 // pred_check_branch
      %1194 = sbr.rel (0) target = $region29
    $region28: #{tpu_custom_call.1} parent=1 // pred_region
      %s1196 = ssub.s32 32, 32
      %1197 = vsyncadd [#allocation3], %s1196
      %s1199 = sshll.u32 [#allocation2], 4
      %s1200 = int_to_ptr.vmem [resolvable:$true] %s1199
      %1202 = dma.vmem_to_hbm [thread:$0]  %s1200, 32, %s6, [#allocation3]
    $region29: #{tpu_custom_call.1} parent=1 // pred_fallthru
      _
    // Predicated region
    $region30: #{tpu_custom_call.1} parent=1 // pred_check
      _
    $region31: #{tpu_custom_call.1} parent=1 // pred_check_branch
      %1204 = sbr.rel (0) target = $region33
    $region32: #{tpu_custom_call.1} parent=1 // pred_region
      %1205 = dma.done [#allocation3], 32
    $region33: #{tpu_custom_call.1} parent=1 // pred_fallthru
      _
    %1206 = vsyncpa [#allocation3], 1

// kernel: tpu_custom_call.1
$region0: #{tpu_custom_call.1}
  #allocation0 [shape = 'u32[]', space=smem, size = 0x4, offset = 0x4, fixed_abs, tag = 'smem constant byte address 0x4 - core index']
  #allocation1 [shape = 'u32[144,128]{1,0:T(1,128)}', space=vmem, size = 0x12000, scoped, tag = 'internal scratch']
  %s0 = inlined_call_operand.vmem [shape: f32[2,1024], index: 0, kind: input, shape index: {}]
  %s1 = inlined_call_operand.vmem [shape: f32[2,128], index: 1, kind: input, shape index: {}]
  %s2 = inlined_call_operand.vmem [shape: bf16[1152,6], index: 2, kind: input, shape index: {}]
  %s3 = inlined_call_operand.vmem [shape: bf16[128,256], index: 3, kind: input, shape index: {}]
  %s4 = inlined_call_operand.vmem [shape: bf16[256,128], index: 4, kind: input, shape index: {}]
  %s5 = inlined_call_operand.vmem [shape: f32[3,256], index: 5, kind: input, shape index: {}]
  %s6 = inlined_call_operand.hbm [shape: f32[2,6], index: 6, kind: output, shape index: {}]
  %s7 = sld [smem:[#allocation0]]
  $region34: #{tpu_custom_call.1} parent=0
    _
  %s9 = ssub.s32 1, %s7
  %s10 = scalar_select 0, %s9, %s7
  $region1: #{tpu_custom_call.1} parent=0
    #allocation2 [shape = 'u8[1024]{0}', space=vmem, size = 0x400, scoped, tag = 'output window, operand 0, single buffered']
    #allocation3 [shape = 's32[1]{0}', space=sflag, size = 0x4, scoped, tag = 'scoped memory for tpu_custom_call.1']
    %11 = vsyncpa [#allocation3], 0
    // Predicated region
    $region2: #{tpu_custom_call.1} parent=1 // pred_check
      _
    $region3: #{tpu_custom_call.1} parent=1 // pred_check_branch
      %13 = sbr.rel (0) target = $region5
    $region4: #{tpu_custom_call.1} parent=1 // pred_region
      _
    $region5: #{tpu_custom_call.1} parent=1 // pred_fallthru
      _
    // Predicated region
    $region6: #{tpu_custom_call.1} parent=1 // pred_check
      _
    $region7: #{tpu_custom_call.1} parent=1 // pred_check_branch
      %15 = sbr.rel (0) target = $region9
    $region8: #{tpu_custom_call.1} parent=1 // pred_region
      _
    $region9: #{tpu_custom_call.1} parent=1 // pred_fallthru
      _
    // Predicated region
    $region10: #{tpu_custom_call.1} parent=1 // pred_check
      _
    $region11: #{tpu_custom_call.1} parent=1 // pred_check_branch
      %17 = sbr.rel (0) target = $region13
    $region12: #{tpu_custom_call.1} parent=1 // pred_region
      _
    $region13: #{tpu_custom_call.1} parent=1 // pred_fallthru
      _
    // Predicated region
    $region14: #{tpu_custom_call.1} parent=1 // pred_check
      _
    $region15: #{tpu_custom_call.1} parent=1 // pred_check_branch
      %19 = sbr.rel (0) target = $region17
    $region16: #{tpu_custom_call.1} parent=1 // pred_region
      _
    $region17: #{tpu_custom_call.1} parent=1 // pred_fallthru
      _
    // Predicated region
    $region18: #{tpu_custom_call.1} parent=1 // pred_check
      _
    $region19: #{tpu_custom_call.1} parent=1 // pred_check_branch
      %21 = sbr.rel (0) target = $region21
    $region20: #{tpu_custom_call.1} parent=1 // pred_region
      _
    $region21: #{tpu_custom_call.1} parent=1 // pred_fallthru
      _
    // Predicated region
    $region22: #{tpu_custom_call.1} parent=1 // pred_check
      _
    $region23: #{tpu_custom_call.1} parent=1 // pred_check_branch
      %23 = sbr.rel (0) target = $region25
    $region24: #{tpu_custom_call.1} parent=1 // pred_region
      _
    $region25: #{tpu_custom_call.1} parent=1 // pred_fallthru
      _
    %v25 = vld [vmem:[%s5] ss:$4 sm:$0x3]
    %v26 = vld [vmem:[%s5 + $0x1] sm:$0x1]
    %v27 = vld [vmem:[%s5 + $0x2] sm:$0x1]
    %v28 = vld [vmem:[%s1] sm:$0x3]
    %v29 = vpack.c.bf16 %v28, %v28
    %v30 = vld [vmem:[%s3] sm:$0xff]
    %v31 = vld [vmem:[%s3 + $0x8] sm:$0xff]
    %v32 = vld [vmem:[%s3 + $0x10] sm:$0xff]
    %v33 = vld [vmem:[%s3 + $0x18] sm:$0xff]
    %v34 = vld [vmem:[%s3 + $0x20] sm:$0xff]
    %v35 = vld [vmem:[%s3 + $0x28] sm:$0xff]
    %v36 = vld [vmem:[%s3 + $0x30] sm:$0xff]
    %v37 = vld [vmem:[%s3 + $0x38] sm:$0xff]
    %v38 = vld [vmem:[%s3 + $0x40] sm:$0xff]
    %v39 = vld [vmem:[%s3 + $0x48] sm:$0xff]
    %v40 = vld [vmem:[%s3 + $0x50] sm:$0xff]
    %v41 = vld [vmem:[%s3 + $0x58] sm:$0xff]
    %v42 = vld [vmem:[%s3 + $0x60] sm:$0xff]
    %v43 = vld [vmem:[%s3 + $0x68] sm:$0xff]
    %v44 = vld [vmem:[%s3 + $0x70] sm:$0xff]
    %v45 = vld [vmem:[%s3 + $0x78] sm:$0xff]
    %v47 = vlaneseq
    %v48 = vshrl.u32 %v47, 7
    %v49 = vsub.s32 0, %v48
    %v50 = vrot.slane %v25, %v49
    %v51 = vlaneseq
    %v52 = vshrl.u32 %v51, 7
    %v53 = vsub.s32 1, %v52
    %v54 = vrot.slane %v25, %v53
    %v73 = vunpack.c.l.b16 %v30
    %v74 = vunpack.c.h.b16 %v30
    %v75 = vunpack.c.l.b16 %v31
    %v76 = vunpack.c.h.b16 %v31
    %v77 = vunpack.c.l.b16 %v32
    %v78 = vunpack.c.h.b16 %v32
    %v79 = vunpack.c.l.b16 %v33
    %v80 = vunpack.c.h.b16 %v33
    %v81 = vunpack.c.l.b16 %v34
    %v82 = vunpack.c.h.b16 %v34
    %v83 = vunpack.c.l.b16 %v35
    %v84 = vunpack.c.h.b16 %v35
    %v85 = vunpack.c.l.b16 %v36
    %v86 = vunpack.c.h.b16 %v36
    %v87 = vunpack.c.l.b16 %v37
    %v88 = vunpack.c.h.b16 %v37
    %v89 = vunpack.c.l.b16 %v38
    %v90 = vunpack.c.h.b16 %v38
    %v91 = vunpack.c.l.b16 %v39
    %v92 = vunpack.c.h.b16 %v39
    %v93 = vunpack.c.l.b16 %v40
    %v94 = vunpack.c.h.b16 %v40
    %v95 = vunpack.c.l.b16 %v41
    %v96 = vunpack.c.h.b16 %v41
    %v97 = vunpack.c.l.b16 %v42
    %v98 = vunpack.c.h.b16 %v42
    %v99 = vunpack.c.l.b16 %v43
    %v100 = vunpack.c.h.b16 %v43
    %v101 = vunpack.c.l.b16 %v44
    %v102 = vunpack.c.h.b16 %v44
    %v103 = vunpack.c.l.b16 %v45
    %v104 = vunpack.c.h.b16 %v45
    %v105 = vpack.c.b16 %v75, %v73
    %v106 = vpack.c.b16 %v76, %v74
    %v107 = vpack.c.b16 %v79, %v77
    %v108 = vpack.c.b16 %v80, %v78
    %v109 = vpack.c.b16 %v83, %v81
    %v110 = vpack.c.b16 %v84, %v82
    %v111 = vpack.c.b16 %v87, %v85
    %v112 = vpack.c.b16 %v88, %v86
    %v113 = vpack.c.b16 %v91, %v89
    %v114 = vpack.c.b16 %v92, %v90
    %v115 = vpack.c.b16 %v95, %v93
    %v116 = vpack.c.b16 %v96, %v94
    %v117 = vpack.c.b16 %v99, %v97
    %v118 = vpack.c.b16 %v100, %v98
    %v119 = vpack.c.b16 %v103, %v101
    %v120 = vpack.c.b16 %v104, %v102
    %137 = vmatprep.subr.bf16.mxu0 %v106
    %138 = vmatpush1.bf16.msra.mxu0 %v105
    %139 = vmatprep.subr.bf16.mxu0 %v108
    %140 = vmatpush1.bf16.msra.mxu0 %v107
    %141 = vmatprep.subr.bf16.mxu0 %v110
    %142 = vmatpush1.bf16.msra.mxu0 %v109
    %143 = vmatprep.subr.bf16.mxu0 %v112
    %144 = vmatpush1.bf16.msra.mxu0 %v111
    %145 = vmatprep.subr.bf16.mxu0 %v114
    %146 = vmatpush1.bf16.msra.mxu0 %v113
    %147 = vmatprep.subr.bf16.mxu0 %v116
    %148 = vmatpush1.bf16.msra.mxu0 %v115
    %149 = vmatprep.subr.bf16.mxu0 %v118
    %150 = vmatpush1.bf16.msra.mxu0 %v117
    %151 = vmatprep.subr.bf16.mxu0 %v120
    %152 = vmatpush1.bf16.msra.mxu0 %v119
    %153 = vmatprep.subr.bf16.mxu0 0
    %154 = vmatpush1.bf16.msra.mxu0 0
    %155 = vmatprep.subr.bf16.mxu0 0
    %156 = vmatpush1.bf16.msra.mxu0 0
    %157 = vmatprep.subr.bf16.mxu0 0
    %158 = vmatpush1.bf16.msra.mxu0 0
    %159 = vmatprep.subr.bf16.mxu0 0
    %160 = vmatpush1.bf16.msra.mxu0 0
    %161 = vmatprep.subr.bf16.mxu0 0
    %162 = vmatpush1.bf16.msra.mxu0 0
    %163 = vmatprep.subr.bf16.mxu0 0
    %164 = vmatpush1.bf16.msra.mxu0 0
    %165 = vmatprep.subr.bf16.mxu0 0
    %166 = vmatpush1.bf16.msra.mxu0 0
    %167 = vmatprep.subr.bf16.mxu0 0
    %168 = vmatpush1.bf16.msra.mxu0 0
    %169 = vmatprep.mubr.bf16.mxu0 0
    %170 = vmatmul.mubr.bf16.gmra.mrb[0].mxu0 %v29
    %v171 = vpop.f32.mrb[0].mxu0
    %v172 = vadd.f32 %v50, %v171
    %v173 = vpop.f32.mrb[0].mxu0
    %v174 = vadd.f32 %v54, %v173
    %v175 = vpop.f32.mrb[0].mxu0
    %v176 = vpop.f32.mrb[0].mxu0
    %177 = vdwg.mxu0
    %v178 = vmax.f32 %v172, 0.0
    %v179 = vmax.f32 %v174, 0.0
    %v180 = vpack.c.bf16 %v178, %v178
    %v181 = vpack.c.bf16 %v179, %v179
    %v182 = vld [vmem:[%s4] sm:$0xf]
    %v183 = vld [vmem:[%s4 + $0x4] sm:$0xf]
    %v184 = vld [vmem:[%s4 + $0x8] sm:$0xf]
    %v185 = vld [vmem:[%s4 + $0xc] sm:$0xf]
    %v186 = vld [vmem:[%s4 + $0x10] sm:$0xf]
    %v187 = vld [vmem:[%s4 + $0x14] sm:$0xf]
    %v188 = vld [vmem:[%s4 + $0x18] sm:$0xf]
    %v189 = vld [vmem:[%s4 + $0x1c] sm:$0xf]
    %v190 = vld [vmem:[%s4 + $0x20] sm:$0xf]
    %v191 = vld [vmem:[%s4 + $0x24] sm:$0xf]
    %v192 = vld [vmem:[%s4 + $0x28] sm:$0xf]
    %v193 = vld [vmem:[%s4 + $0x2c] sm:$0xf]
    %v194 = vld [vmem:[%s4 + $0x30] sm:$0xf]
    %v195 = vld [vmem:[%s4 + $0x34] sm:$0xf]
    %v196 = vld [vmem:[%s4 + $0x38] sm:$0xf]
    %v197 = vld [vmem:[%s4 + $0x3c] sm:$0xf]
    %v198 = vld [vmem:[%s4 + $0x40] sm:$0xf]
    %v199 = vld [vmem:[%s4 + $0x44] sm:$0xf]
    %v200 = vld [vmem:[%s4 + $0x48] sm:$0xf]
    %v201 = vld [vmem:[%s4 + $0x4c] sm:$0xf]
    %v202 = vld [vmem:[%s4 + $0x50] sm:$0xf]
    %v203 = vld [vmem:[%s4 + $0x54] sm:$0xf]
    %v204 = vld [vmem:[%s4 + $0x58] sm:$0xf]
    %v205 = vld [vmem:[%s4 + $0x5c] sm:$0xf]
    %v206 = vld [vmem:[%s4 + $0x60] sm:$0xf]
    %v207 = vld [vmem:[%s4 + $0x64] sm:$0xf]
    %v208 = vld [vmem:[%s4 + $0x68] sm:$0xf]
    %v209 = vld [vmem:[%s4 + $0x6c] sm:$0xf]
    %v210 = vld [vmem:[%s4 + $0x70] sm:$0xf]
    %v211 = vld [vmem:[%s4 + $0x74] sm:$0xf]
    %v212 = vld [vmem:[%s4 + $0x78] sm:$0xf]
    %v213 = vld [vmem:[%s4 + $0x7c] sm:$0xf]
    %v214 = vlaneseq
    %v215 = vshrl.u32 %v214, 7
    %v216 = vsub.s32 0, %v215
    %v217 = vrot.slane %v26, %v216
    %v250 = vunpack.c.l.b16 %v182
    %v251 = vunpack.c.l.b16 %v183
    %v252 = vunpack.c.l.b16 %v184
    %v253 = vunpack.c.l.b16 %v185
    %v254 = vunpack.c.l.b16 %v186
    %v255 = vunpack.c.l.b16 %v187
    %v256 = vunpack.c.l.b16 %v188
    %v257 = vunpack.c.l.b16 %v189
    %v258 = vunpack.c.l.b16 %v190
    %v259 = vunpack.c.l.b16 %v191
    %v260 = vunpack.c.l.b16 %v192
    %v261 = vunpack.c.l.b16 %v193
    %v262 = vunpack.c.l.b16 %v194
    %v263 = vunpack.c.l.b16 %v195
    %v264 = vunpack.c.l.b16 %v196
    %v265 = vunpack.c.l.b16 %v197
    %v266 = vunpack.c.l.b16 %v198
    %v267 = vunpack.c.l.b16 %v199
    %v268 = vunpack.c.l.b16 %v200
    %v269 = vunpack.c.l.b16 %v201
    %v270 = vunpack.c.l.b16 %v202
    %v271 = vunpack.c.l.b16 %v203
    %v272 = vunpack.c.l.b16 %v204
    %v273 = vunpack.c.l.b16 %v205
    %v274 = vunpack.c.l.b16 %v206
    %v275 = vunpack.c.l.b16 %v207
    %v276 = vunpack.c.l.b16 %v208
    %v277 = vunpack.c.l.b16 %v209
    %v278 = vunpack.c.l.b16 %v210
    %v279 = vunpack.c.l.b16 %v211
    %v280 = vunpack.c.l.b16 %v212
    %v281 = vunpack.c.l.b16 %v213
    %v282 = vpack.c.b16 %v251, %v250
    %v283 = vpack.c.b16 %v253, %v252
    %v284 = vpack.c.b16 %v255, %v254
    %v285 = vpack.c.b16 %v257, %v256
    %v286 = vpack.c.b16 %v259, %v258
    %v287 = vpack.c.b16 %v261, %v260
    %v288 = vpack.c.b16 %v263, %v262
    %v289 = vpack.c.b16 %v265, %v264
    %v290 = vpack.c.b16 %v267, %v266
    %v291 = vpack.c.b16 %v269, %v268
    %v292 = vpack.c.b16 %v271, %v270
    %v293 = vpack.c.b16 %v273, %v272
    %v294 = vpack.c.b16 %v275, %v274
    %v295 = vpack.c.b16 %v277, %v276
    %v296 = vpack.c.b16 %v279, %v278
    %v297 = vpack.c.b16 %v281, %v280
    %314 = vmatprep.subr.bf16.mxu0 0
    %315 = vmatpush1.bf16.msra.mxu0 %v282
    %316 = vmatprep.subr.bf16.mxu0 0
    %317 = vmatpush1.bf16.msra.mxu0 %v283
    %318 = vmatprep.subr.bf16.mxu0 0
    %319 = vmatpush1.bf16.msra.mxu0 %v284
    %320 = vmatprep.subr.bf16.mxu0 0
    %321 = vmatpush1.bf16.msra.mxu0 %v285
    %322 = vmatprep.subr.bf16.mxu0 0
    %323 = vmatpush1.bf16.msra.mxu0 %v286
    %324 = vmatprep.subr.bf16.mxu0 0
    %325 = vmatpush1.bf16.msra.mxu0 %v287
    %326 = vmatprep.subr.bf16.mxu0 0
    %327 = vmatpush1.bf16.msra.mxu0 %v288
    %328 = vmatprep.subr.bf16.mxu0 0
    %329 = vmatpush1.bf16.msra.mxu0 %v289
    %330 = vmatprep.subr.bf16.mxu0 0
    %331 = vmatpush1.bf16.msra.mxu0 %v290
    %332 = vmatprep.subr.bf16.mxu0 0
    %333 = vmatpush1.bf16.msra.mxu0 %v291
    %334 = vmatprep.subr.bf16.mxu0 0
    %335 = vmatpush1.bf16.msra.mxu0 %v292
    %336 = vmatprep.subr.bf16.mxu0 0
    %337 = vmatpush1.bf16.msra.mxu0 %v293
    %338 = vmatprep.subr.bf16.mxu0 0
    %339 = vmatpush1.bf16.msra.mxu0 %v294
    %340 = vmatprep.subr.bf16.mxu0 0
    %341 = vmatpush1.bf16.msra.mxu0 %v295
    %342 = vmatprep.subr.bf16.mxu0 0
    %343 = vmatpush1.bf16.msra.mxu0 %v296
    %344 = vmatprep.subr.bf16.mxu0 0
    %345 = vmatpush1.bf16.msra.mxu0 %v297
    %346 = vmatprep.mubr.bf16.mxu0 %v181
    %347 = vmatmul.mubr.bf16.gmra.mrb[0].mxu0 %v180
    %v348 = vpop.f32.mrb[0].mxu0
    %v349 = vadd.f32 %v217, %v348
    %v350 = vpop.f32.mrb[0].mxu0
    %v351 = vpop.f32.mrb[0].mxu0
    %v352 = vpop.f32.mrb[0].mxu0
    %353 = vdwg.mxu0
    %v354 = vmax.f32 %v349, 0.0
    %v355 = vld [vmem:[%s2] sm:$0xf]
    %v356 = vld [vmem:[%s2 + $0x4] sm:$0xf]
    %v357 = vld [vmem:[%s2 + $0x8] sm:$0xf]
    %v358 = vld [vmem:[%s2 + $0xc] sm:$0xf]
    %v359 = vld [vmem:[%s2 + $0x10] sm:$0xf]
    %v360 = vld [vmem:[%s2 + $0x14] sm:$0xf]
    %v361 = vld [vmem:[%s2 + $0x18] sm:$0xf]
    %v362 = vld [vmem:[%s2 + $0x1c] sm:$0xf]
    %v363 = vld [vmem:[%s2 + $0x20] sm:$0xf]
    %v364 = vld [vmem:[%s2 + $0x24] sm:$0xf]
    %v365 = vld [vmem:[%s2 + $0x28] sm:$0xf]
    %v366 = vld [vmem:[%s2 + $0x2c] sm:$0xf]
    %v367 = vld [vmem:[%s2 + $0x30] sm:$0xf]
    %v368 = vld [vmem:[%s2 + $0x34] sm:$0xf]
    %v369 = vld [vmem:[%s2 + $0x38] sm:$0xf]
    %v370 = vld [vmem:[%s2 + $0x3c] sm:$0xf]
    %v371 = vld [vmem:[%s2 + $0x40] sm:$0xf]
    %v372 = vld [vmem:[%s2 + $0x44] sm:$0xf]
    %v373 = vld [vmem:[%s2 + $0x48] sm:$0xf]
    %v374 = vld [vmem:[%s2 + $0x4c] sm:$0xf]
    %v375 = vld [vmem:[%s2 + $0x50] sm:$0xf]
    %v376 = vld [vmem:[%s2 + $0x54] sm:$0xf]
    %v377 = vld [vmem:[%s2 + $0x58] sm:$0xf]
    %v378 = vld [vmem:[%s2 + $0x5c] sm:$0xf]
    %v379 = vld [vmem:[%s2 + $0x60] sm:$0xf]
    %v380 = vld [vmem:[%s2 + $0x64] sm:$0xf]
    %v381 = vld [vmem:[%s2 + $0x68] sm:$0xf]
    %v382 = vld [vmem:[%s2 + $0x6c] sm:$0xf]
    %v383 = vld [vmem:[%s2 + $0x70] sm:$0xf]
    %v384 = vld [vmem:[%s2 + $0x74] sm:$0xf]
    %v385 = vld [vmem:[%s2 + $0x78] sm:$0xf]
    %v386 = vld [vmem:[%s2 + $0x7c] sm:$0xf]
    %v387 = vld [vmem:[%s2 + $0x80] sm:$0xf]
    %v388 = vld [vmem:[%s2 + $0x84] sm:$0xf]
    %v389 = vld [vmem:[%s2 + $0x88] sm:$0xf]
    %v390 = vld [vmem:[%s2 + $0x8c] sm:$0xf]
    %v391 = vld [vmem:[%s2 + $0x90] sm:$0xf]
    %v392 = vld [vmem:[%s2 + $0x94] sm:$0xf]
    %v393 = vld [vmem:[%s2 + $0x98] sm:$0xf]
    %v394 = vld [vmem:[%s2 + $0x9c] sm:$0xf]
    %v395 = vld [vmem:[%s2 + $0xa0] sm:$0xf]
    %v396 = vld [vmem:[%s2 + $0xa4] sm:$0xf]
    %v397 = vld [vmem:[%s2 + $0xa8] sm:$0xf]
    %v398 = vld [vmem:[%s2 + $0xac] sm:$0xf]
    %v399 = vld [vmem:[%s2 + $0xb0] sm:$0xf]
    %v400 = vld [vmem:[%s2 + $0xb4] sm:$0xf]
    %v401 = vld [vmem:[%s2 + $0xb8] sm:$0xf]
    %v402 = vld [vmem:[%s2 + $0xbc] sm:$0xf]
    %v403 = vld [vmem:[%s2 + $0xc0] sm:$0xf]
    %v404 = vld [vmem:[%s2 + $0xc4] sm:$0xf]
    %v405 = vld [vmem:[%s2 + $0xc8] sm:$0xf]
    %v406 = vld [vmem:[%s2 + $0xcc] sm:$0xf]
    %v407 = vld [vmem:[%s2 + $0xd0] sm:$0xf]
    %v408 = vld [vmem:[%s2 + $0xd4] sm:$0xf]
    %v409 = vld [vmem:[%s2 + $0xd8] sm:$0xf]
    %v410 = vld [vmem:[%s2 + $0xdc] sm:$0xf]
    %v411 = vld [vmem:[%s2 + $0xe0] sm:$0xf]
    %v412 = vld [vmem:[%s2 + $0xe4] sm:$0xf]
    %v413 = vld [vmem:[%s2 + $0xe8] sm:$0xf]
    %v414 = vld [vmem:[%s2 + $0xec] sm:$0xf]
    %v415 = vld [vmem:[%s2 + $0xf0] sm:$0xf]
    %v416 = vld [vmem:[%s2 + $0xf4] sm:$0xf]
    %v417 = vld [vmem:[%s2 + $0xf8] sm:$0xf]
    %v418 = vld [vmem:[%s2 + $0xfc] sm:$0xf]
    %v419 = vld [vmem:[%s2 + $0x100] sm:$0xf]
    %v420 = vld [vmem:[%s2 + $0x104] sm:$0xf]
    %v421 = vld [vmem:[%s2 + $0x108] sm:$0xf]
    %v422 = vld [vmem:[%s2 + $0x10c] sm:$0xf]
    %v423 = vld [vmem:[%s2 + $0x110] sm:$0xf]
    %v424 = vld [vmem:[%s2 + $0x114] sm:$0xf]
    %v425 = vld [vmem:[%s2 + $0x118] sm:$0xf]
    %v426 = vld [vmem:[%s2 + $0x11c] sm:$0xf]
    %v427 = vld [vmem:[%s2 + $0x120] sm:$0xf]
    %v428 = vld [vmem:[%s2 + $0x124] sm:$0xf]
    %v429 = vld [vmem:[%s2 + $0x128] sm:$0xf]
    %v430 = vld [vmem:[%s2 + $0x12c] sm:$0xf]
    %v431 = vld [vmem:[%s2 + $0x130] sm:$0xf]
    %v432 = vld [vmem:[%s2 + $0x134] sm:$0xf]
    %v433 = vld [vmem:[%s2 + $0x138] sm:$0xf]
    %v434 = vld [vmem:[%s2 + $0x13c] sm:$0xf]
    %v435 = vld [vmem:[%s2 + $0x140] sm:$0xf]
    %v436 = vld [vmem:[%s2 + $0x144] sm:$0xf]
    %v437 = vld [vmem:[%s2 + $0x148] sm:$0xf]
    %v438 = vld [vmem:[%s2 + $0x14c] sm:$0xf]
    %v439 = vld [vmem:[%s2 + $0x150] sm:$0xf]
    %v440 = vld [vmem:[%s2 + $0x154] sm:$0xf]
    %v441 = vld [vmem:[%s2 + $0x158] sm:$0xf]
    %v442 = vld [vmem:[%s2 + $0x15c] sm:$0xf]
    %v443 = vld [vmem:[%s2 + $0x160] sm:$0xf]
    %v444 = vld [vmem:[%s2 + $0x164] sm:$0xf]
    %v445 = vld [vmem:[%s2 + $0x168] sm:$0xf]
    %v446 = vld [vmem:[%s2 + $0x16c] sm:$0xf]
    %v447 = vld [vmem:[%s2 + $0x170] sm:$0xf]
    %v448 = vld [vmem:[%s2 + $0x174] sm:$0xf]
    %v449 = vld [vmem:[%s2 + $0x178] sm:$0xf]
    %v450 = vld [vmem:[%s2 + $0x17c] sm:$0xf]
    %v451 = vld [vmem:[%s2 + $0x180] sm:$0xf]
    %v452 = vld [vmem:[%s2 + $0x184] sm:$0xf]
    %v453 = vld [vmem:[%s2 + $0x188] sm:$0xf]
    %v454 = vld [vmem:[%s2 + $0x18c] sm:$0xf]
    %v455 = vld [vmem:[%s2 + $0x190] sm:$0xf]
    %v456 = vld [vmem:[%s2 + $0x194] sm:$0xf]
    %v457 = vld [vmem:[%s2 + $0x198] sm:$0xf]
    %v458 = vld [vmem:[%s2 + $0x19c] sm:$0xf]
    %v459 = vld [vmem:[%s2 + $0x1a0] sm:$0xf]
    %v460 = vld [vmem:[%s2 + $0x1a4] sm:$0xf]
    %v461 = vld [vmem:[%s2 + $0x1a8] sm:$0xf]
    %v462 = vld [vmem:[%s2 + $0x1ac] sm:$0xf]
    %v463 = vld [vmem:[%s2 + $0x1b0] sm:$0xf]
    %v464 = vld [vmem:[%s2 + $0x1b4] sm:$0xf]
    %v465 = vld [vmem:[%s2 + $0x1b8] sm:$0xf]
    %v466 = vld [vmem:[%s2 + $0x1bc] sm:$0xf]
    %v467 = vld [vmem:[%s2 + $0x1c0] sm:$0xf]
    %v468 = vld [vmem:[%s2 + $0x1c4] sm:$0xf]
    %v469 = vld [vmem:[%s2 + $0x1c8] sm:$0xf]
    %v470 = vld [vmem:[%s2 + $0x1cc] sm:$0xf]
    %v471 = vld [vmem:[%s2 + $0x1d0] sm:$0xf]
    %v472 = vld [vmem:[%s2 + $0x1d4] sm:$0xf]
    %v473 = vld [vmem:[%s2 + $0x1d8] sm:$0xf]
    %v474 = vld [vmem:[%s2 + $0x1dc] sm:$0xf]
    %v475 = vld [vmem:[%s2 + $0x1e0] sm:$0xf]
    %v476 = vld [vmem:[%s2 + $0x1e4] sm:$0xf]
    %v477 = vld [vmem:[%s2 + $0x1e8] sm:$0xf]
    %v478 = vld [vmem:[%s2 + $0x1ec] sm:$0xf]
    %v479 = vld [vmem:[%s2 + $0x1f0] sm:$0xf]
    %v480 = vld [vmem:[%s2 + $0x1f4] sm:$0xf]
    %v481 = vld [vmem:[%s2 + $0x1f8] sm:$0xf]
    %v482 = vld [vmem:[%s2 + $0x1fc] sm:$0xf]
    %v483 = vld [vmem:[%s2 + $0x200] sm:$0xf]
    %v484 = vld [vmem:[%s2 + $0x204] sm:$0xf]
    %v485 = vld [vmem:[%s2 + $0x208] sm:$0xf]
    %v486 = vld [vmem:[%s2 + $0x20c] sm:$0xf]
    %v487 = vld [vmem:[%s2 + $0x210] sm:$0xf]
    %v488 = vld [vmem:[%s2 + $0x214] sm:$0xf]
    %v489 = vld [vmem:[%s2 + $0x218] sm:$0xf]
    %v490 = vld [vmem:[%s2 + $0x21c] sm:$0xf]
    %v491 = vld [vmem:[%s2 + $0x220] sm:$0xf]
    %v492 = vld [vmem:[%s2 + $0x224] sm:$0xf]
    %v493 = vld [vmem:[%s2 + $0x228] sm:$0xf]
    %v494 = vld [vmem:[%s2 + $0x22c] sm:$0xf]
    %v495 = vld [vmem:[%s2 + $0x230] sm:$0xf]
    %v496 = vld [vmem:[%s2 + $0x234] sm:$0xf]
    %v497 = vld [vmem:[%s2 + $0x238] sm:$0xf]
    %v498 = vld [vmem:[%s2 + $0x23c] sm:$0xf]
    %v499 = vld [vmem:[%s0] sm:$0xff]
    %v500 = vld [vmem:[%s0 + $0x8] sm:$0xff]
    %v503 = vcombine.high %v499, %v499
    %v505 = vunpack.c.l.s4 1983009808
    %v506 = vunpack.c.0.s8 %v505
    %v507 = vlaneseq
    %v508 = vshrl.u32 %v507, 7
    %v509 = vsub.s32 %v506, %v508
    %v510 = vrot.slane %v499, %v509
    %v512 = vunpack.c.l.s4 1983009808
    %v513 = vunpack.c.0.s8 %v512
    %v514 = vlaneseq
    %v515 = vshrl.u32 %v514, 7
    %v516 = vsub.s32 %v513, %v515
    %v517 = vrot.slane %v503, %v516
    %v518 = vcombine.high %v510, %v510
    %v519 = vcombine.high %v517, %v517
    %v520 = vcombine.high %v500, %v500
    %v522 = vunpack.c.l.s4 1983009808
    %v523 = vunpack.c.0.s8 %v522
    %v524 = vlaneseq
    %v525 = vshrl.u32 %v524, 7
    %v526 = vsub.s32 %v523, %v525
    %v527 = vrot.slane %v500, %v526
    %v529 = vunpack.c.l.s4 1983009808
    %v530 = vunpack.c.0.s8 %v529
    %v531 = vlaneseq
    %v532 = vshrl.u32 %v531, 7
    %v533 = vsub.s32 %v530, %v532
    %v534 = vrot.slane %v520, %v533
    %v535 = vcombine.high %v527, %v527
    %v536 = vcombine.high %v534, %v534
    %v545 = vpack.c.bf16 %v510, %v510
    %v546 = vpack.c.bf16 %v518, %v518
    %v547 = vpack.c.bf16 %v517, %v517
    %v548 = vpack.c.bf16 %v519, %v519
    %v549 = vpack.c.bf16 %v527, %v527
    %v550 = vpack.c.bf16 %v535, %v535
    %v551 = vpack.c.bf16 %v534, %v534
    %v552 = vpack.c.bf16 %v536, %v536
    %v553 = vpack.c.bf16 %v354, %v354
    %v570 = vunpack.c.l.b16 %v483
    %v571 = vunpack.c.l.b16 %v484
    %v572 = vunpack.c.l.b16 %v485
    %v573 = vunpack.c.l.b16 %v486
    %v574 = vunpack.c.l.b16 %v487
    %v575 = vunpack.c.l.b16 %v488
    %v576 = vunpack.c.l.b16 %v489
    %v577 = vunpack.c.l.b16 %v490
    %v578 = vunpack.c.l.b16 %v491
    %v579 = vunpack.c.l.b16 %v492
    %v580 = vunpack.c.l.b16 %v493
    %v581 = vunpack.c.l.b16 %v494
    %v582 = vunpack.c.l.b16 %v495
    %v583 = vunpack.c.l.b16 %v496
    %v584 = vunpack.c.l.b16 %v497
    %v585 = vunpack.c.l.b16 %v498
    %v586 = vpack.c.b16 %v571, %v570
    %v587 = vpack.c.b16 %v573, %v572
    %v588 = vpack.c.b16 %v575, %v574
    %v589 = vpack.c.b16 %v577, %v576
    %v590 = vpack.c.b16 %v579, %v578
    %v591 = vpack.c.b16 %v581, %v580
    %v592 = vpack.c.b16 %v583, %v582
    %v593 = vpack.c.b16 %v585, %v584
    %602 = vmatprep.subr.bf16.mxu0 0
    %603 = vmatpush1.bf16.msra.mxu0 %v586
    %604 = vmatprep.subr.bf16.mxu0 0
    %605 = vmatpush1.bf16.msra.mxu0 %v587
    %606 = vmatprep.subr.bf16.mxu0 0
    %607 = vmatpush1.bf16.msra.mxu0 %v588
    %608 = vmatprep.subr.bf16.mxu0 0
    %609 = vmatpush1.bf16.msra.mxu0 %v589
    %610 = vmatprep.subr.bf16.mxu0 0
    %611 = vmatpush1.bf16.msra.mxu0 %v590
    %612 = vmatprep.subr.bf16.mxu0 0
    %613 = vmatpush1.bf16.msra.mxu0 %v591
    %614 = vmatprep.subr.bf16.mxu0 0
    %615 = vmatpush1.bf16.msra.mxu0 %v592
    %616 = vmatprep.subr.bf16.mxu0 0
    %617 = vmatpush1.bf16.msra.mxu0 %v593
    %618 = vmatprep.subr.bf16.mxu0 0
    %619 = vmatpush1.bf16.msra.mxu0 0
    %620 = vmatprep.subr.bf16.mxu0 0
    %621 = vmatpush1.bf16.msra.mxu0 0
    %622 = vmatprep.subr.bf16.mxu0 0
    %623 = vmatpush1.bf16.msra.mxu0 0
    %624 = vmatprep.subr.bf16.mxu0 0
    %625 = vmatpush1.bf16.msra.mxu0 0
    %626 = vmatprep.subr.bf16.mxu0 0
    %627 = vmatpush1.bf16.msra.mxu0 0
    %628 = vmatprep.subr.bf16.mxu0 0
    %629 = vmatpush1.bf16.msra.mxu0 0
    %630 = vmatprep.subr.bf16.mxu0 0
    %631 = vmatpush1.bf16.msra.mxu0 0
    %632 = vmatprep.subr.bf16.mxu0 0
    %633 = vmatpush1.bf16.msra.mxu0 0
    %634 = vmatprep.mubr.bf16.mxu0 0
    %635 = vmatmul.mubr.bf16.gmra.mrb[0].mxu0 %v553
    %v636 = vpop.f32.mrb[0].mxu0
    %v637 = vadd.f32 0.0, %v636
    %v638 = vpop.f32.mrb[0].mxu0
    %v639 = vpop.f32.mrb[0].mxu0
    %v640 = vpop.f32.mrb[0].mxu0
    %641 = vdwg.mxu0
    %v770 = vunpack.c.l.b16 %v355
    %v771 = vunpack.c.l.b16 %v356
    %v772 = vunpack.c.l.b16 %v357
    %v773 = vunpack.c.l.b16 %v358
    %v774 = vunpack.c.l.b16 %v359
    %v775 = vunpack.c.l.b16 %v360
    %v776 = vunpack.c.l.b16 %v361
    %v777 = vunpack.c.l.b16 %v362
    %v778 = vunpack.c.l.b16 %v363
    %v779 = vunpack.c.l.b16 %v364
    %v780 = vunpack.c.l.b16 %v365
    %v781 = vunpack.c.l.b16 %v366
    %v782 = vunpack.c.l.b16 %v367
    %v783 = vunpack.c.l.b16 %v368
    %v784 = vunpack.c.l.b16 %v369
    %v785 = vunpack.c.l.b16 %v370
    %v786 = vunpack.c.l.b16 %v371
    %v787 = vunpack.c.l.b16 %v372
    %v788 = vunpack.c.l.b16 %v373
    %v789 = vunpack.c.l.b16 %v374
    %v790 = vunpack.c.l.b16 %v375
    %v791 = vunpack.c.l.b16 %v376
    %v792 = vunpack.c.l.b16 %v377
    %v793 = vunpack.c.l.b16 %v378
    %v794 = vunpack.c.l.b16 %v379
    %v795 = vunpack.c.l.b16 %v380
    %v796 = vunpack.c.l.b16 %v381
    %v797 = vunpack.c.l.b16 %v382
    %v798 = vunpack.c.l.b16 %v383
    %v799 = vunpack.c.l.b16 %v384
    %v800 = vunpack.c.l.b16 %v385
    %v801 = vunpack.c.l.b16 %v386
    %v802 = vunpack.c.l.b16 %v387
    %v803 = vunpack.c.l.b16 %v388
    %v804 = vunpack.c.l.b16 %v389
    %v805 = vunpack.c.l.b16 %v390
    %v806 = vunpack.c.l.b16 %v391
    %v807 = vunpack.c.l.b16 %v392
    %v808 = vunpack.c.l.b16 %v393
    %v809 = vunpack.c.l.b16 %v394
    %v810 = vunpack.c.l.b16 %v395
    %v811 = vunpack.c.l.b16 %v396
    %v812 = vunpack.c.l.b16 %v397
    %v813 = vunpack.c.l.b16 %v398
    %v814 = vunpack.c.l.b16 %v399
    %v815 = vunpack.c.l.b16 %v400
    %v816 = vunpack.c.l.b16 %v401
    %v817 = vunpack.c.l.b16 %v402
    %v818 = vunpack.c.l.b16 %v403
    %v819 = vunpack.c.l.b16 %v404
    %v820 = vunpack.c.l.b16 %v405
    %v821 = vunpack.c.l.b16 %v406
    %v822 = vunpack.c.l.b16 %v407
    %v823 = vunpack.c.l.b16 %v408
    %v824 = vunpack.c.l.b16 %v409
    %v825 = vunpack.c.l.b16 %v410
    %v826 = vunpack.c.l.b16 %v411
    %v827 = vunpack.c.l.b16 %v412
    %v828 = vunpack.c.l.b16 %v413
    %v829 = vunpack.c.l.b16 %v414
    %v830 = vunpack.c.l.b16 %v415
    %v831 = vunpack.c.l.b16 %v416
    %v832 = vunpack.c.l.b16 %v417
    %v833 = vunpack.c.l.b16 %v418
    %v834 = vunpack.c.l.b16 %v419
    %v835 = vunpack.c.l.b16 %v420
    %v836 = vunpack.c.l.b16 %v421
    %v837 = vunpack.c.l.b16 %v422
    %v838 = vunpack.c.l.b16 %v423
    %v839 = vunpack.c.l.b16 %v424
    %v840 = vunpack.c.l.b16 %v425
    %v841 = vunpack.c.l.b16 %v426
    %v842 = vunpack.c.l.b16 %v427
    %v843 = vunpack.c.l.b16 %v428
    %v844 = vunpack.c.l.b16 %v429
    %v845 = vunpack.c.l.b16 %v430
    %v846 = vunpack.c.l.b16 %v431
    %v847 = vunpack.c.l.b16 %v432
    %v848 = vunpack.c.l.b16 %v433
    %v849 = vunpack.c.l.b16 %v434
    %v850 = vunpack.c.l.b16 %v435
    %v851 = vunpack.c.l.b16 %v436
    %v852 = vunpack.c.l.b16 %v437
    %v853 = vunpack.c.l.b16 %v438
    %v854 = vunpack.c.l.b16 %v439
    %v855 = vunpack.c.l.b16 %v440
    %v856 = vunpack.c.l.b16 %v441
    %v857 = vunpack.c.l.b16 %v442
    %v858 = vunpack.c.l.b16 %v443
    %v859 = vunpack.c.l.b16 %v444
    %v860 = vunpack.c.l.b16 %v445
    %v861 = vunpack.c.l.b16 %v446
    %v862 = vunpack.c.l.b16 %v447
    %v863 = vunpack.c.l.b16 %v448
    %v864 = vunpack.c.l.b16 %v449
    %v865 = vunpack.c.l.b16 %v450
    %v866 = vunpack.c.l.b16 %v451
    %v867 = vunpack.c.l.b16 %v452
    %v868 = vunpack.c.l.b16 %v453
    %v869 = vunpack.c.l.b16 %v454
    %v870 = vunpack.c.l.b16 %v455
    %v871 = vunpack.c.l.b16 %v456
    %v872 = vunpack.c.l.b16 %v457
    %v873 = vunpack.c.l.b16 %v458
    %v874 = vunpack.c.l.b16 %v459
    %v875 = vunpack.c.l.b16 %v460
    %v876 = vunpack.c.l.b16 %v461
    %v877 = vunpack.c.l.b16 %v462
    %v878 = vunpack.c.l.b16 %v463
    %v879 = vunpack.c.l.b16 %v464
    %v880 = vunpack.c.l.b16 %v465
    %v881 = vunpack.c.l.b16 %v466
    %v882 = vunpack.c.l.b16 %v467
    %v883 = vunpack.c.l.b16 %v468
    %v884 = vunpack.c.l.b16 %v469
    %v885 = vunpack.c.l.b16 %v470
    %v886 = vunpack.c.l.b16 %v471
    %v887 = vunpack.c.l.b16 %v472
    %v888 = vunpack.c.l.b16 %v473
    %v889 = vunpack.c.l.b16 %v474
    %v890 = vunpack.c.l.b16 %v475
    %v891 = vunpack.c.l.b16 %v476
    %v892 = vunpack.c.l.b16 %v477
    %v893 = vunpack.c.l.b16 %v478
    %v894 = vunpack.c.l.b16 %v479
    %v895 = vunpack.c.l.b16 %v480
    %v896 = vunpack.c.l.b16 %v481
    %v897 = vunpack.c.l.b16 %v482
    %v898 = vpack.c.b16 %v771, %v770
    %v899 = vpack.c.b16 %v773, %v772
    %v900 = vpack.c.b16 %v775, %v774
    %v901 = vpack.c.b16 %v777, %v776
    %v902 = vpack.c.b16 %v779, %v778
    %v903 = vpack.c.b16 %v781, %v780
    %v904 = vpack.c.b16 %v783, %v782
    %v905 = vpack.c.b16 %v785, %v784
    %v906 = vpack.c.b16 %v787, %v786
    %v907 = vpack.c.b16 %v789, %v788
    %v908 = vpack.c.b16 %v791, %v790
    %v909 = vpack.c.b16 %v793, %v792
    %v910 = vpack.c.b16 %v795, %v794
    %v911 = vpack.c.b16 %v797, %v796
    %v912 = vpack.c.b16 %v799, %v798
    %v913 = vpack.c.b16 %v801, %v800
    %v914 = vpack.c.b16 %v803, %v802
    %v915 = vpack.c.b16 %v805, %v804
    %v916 = vpack.c.b16 %v807, %v806
    %v917 = vpack.c.b16 %v809, %v808
    %v918 = vpack.c.b16 %v811, %v810
    %v919 = vpack.c.b16 %v813, %v812
    %v920 = vpack.c.b16 %v815, %v814
    %v921 = vpack.c.b16 %v817, %v816
    %v922 = vpack.c.b16 %v819, %v818
    %v923 = vpack.c.b16 %v821, %v820
    %v924 = vpack.c.b16 %v823, %v822
    %v925 = vpack.c.b16 %v825, %v824
    %v926 = vpack.c.b16 %v827, %v826
    %v927 = vpack.c.b16 %v829, %v828
    %v928 = vpack.c.b16 %v831, %v830
    %v929 = vpack.c.b16 %v833, %v832
    %v930 = vpack.c.b16 %v835, %v834
    %v931 = vpack.c.b16 %v837, %v836
    %v932 = vpack.c.b16 %v839, %v838
    %v933 = vpack.c.b16 %v841, %v840
    %v934 = vpack.c.b16 %v843, %v842
    %v935 = vpack.c.b16 %v845, %v844
    %v936 = vpack.c.b16 %v847, %v846
    %v937 = vpack.c.b16 %v849, %v848
    %v938 = vpack.c.b16 %v851, %v850
    %v939 = vpack.c.b16 %v853, %v852
    %v940 = vpack.c.b16 %v855, %v854
    %v941 = vpack.c.b16 %v857, %v856
    %v942 = vpack.c.b16 %v859, %v858
    %v943 = vpack.c.b16 %v861, %v860
    %v944 = vpack.c.b16 %v863, %v862
    %v945 = vpack.c.b16 %v865, %v864
    %v946 = vpack.c.b16 %v867, %v866
    %v947 = vpack.c.b16 %v869, %v868
    %v948 = vpack.c.b16 %v871, %v870
    %v949 = vpack.c.b16 %v873, %v872
    %v950 = vpack.c.b16 %v875, %v874
    %v951 = vpack.c.b16 %v877, %v876
    %v952 = vpack.c.b16 %v879, %v878
    %v953 = vpack.c.b16 %v881, %v880
    %v954 = vpack.c.b16 %v883, %v882
    %v955 = vpack.c.b16 %v885, %v884
    %v956 = vpack.c.b16 %v887, %v886
    %v957 = vpack.c.b16 %v889, %v888
    %v958 = vpack.c.b16 %v891, %v890
    %v959 = vpack.c.b16 %v893, %v892
    %v960 = vpack.c.b16 %v895, %v894
    %v961 = vpack.c.b16 %v897, %v896
    %1026 = vmatprep.subr.bf16.mxu0 0
    %1027 = vmatpush1.bf16.msra.mxu0 %v898
    %1028 = vmatprep.subr.bf16.mxu0 0
    %1029 = vmatpush1.bf16.msra.mxu0 %v899
    %1030 = vmatprep.subr.bf16.mxu0 0
    %1031 = vmatpush1.bf16.msra.mxu0 %v900
    %1032 = vmatprep.subr.bf16.mxu0 0
    %1033 = vmatpush1.bf16.msra.mxu0 %v901
    %1034 = vmatprep.subr.bf16.mxu0 0
    %1035 = vmatpush1.bf16.msra.mxu0 %v902
    %1036 = vmatprep.subr.bf16.mxu0 0
    %1037 = vmatpush1.bf16.msra.mxu0 %v903
    %1038 = vmatprep.subr.bf16.mxu0 0
    %1039 = vmatpush1.bf16.msra.mxu0 %v904
    %1040 = vmatprep.subr.bf16.mxu0 0
    %1041 = vmatpush1.bf16.msra.mxu0 %v905
    %1042 = vmatprep.subr.bf16.mxu0 0
    %1043 = vmatpush1.bf16.msra.mxu0 %v906
    %1044 = vmatprep.subr.bf16.mxu0 0
    %1045 = vmatpush1.bf16.msra.mxu0 %v907
    %1046 = vmatprep.subr.bf16.mxu0 0
    %1047 = vmatpush1.bf16.msra.mxu0 %v908
    %1048 = vmatprep.subr.bf16.mxu0 0
    %1049 = vmatpush1.bf16.msra.mxu0 %v909
    %1050 = vmatprep.subr.bf16.mxu0 0
    %1051 = vmatpush1.bf16.msra.mxu0 %v910
    %1052 = vmatprep.subr.bf16.mxu0 0
    %1053 = vmatpush1.bf16.msra.mxu0 %v911
    %1054 = vmatprep.subr.bf16.mxu0 0
    %1055 = vmatpush1.bf16.msra.mxu0 %v912
    %1056 = vmatprep.subr.bf16.mxu0 0
    %1057 = vmatpush1.bf16.msra.mxu0 %v913
    %1058 = vmatprep.mubr.bf16.mxu0 %v546
    %1059 = vmatmul.mubr.bf16.gmra.mrb[0].mxu0 %v545
    %v1060 = vpop.f32.mrb[0].mxu0
    %v1061 = vadd.f32 %v637, %v1060
    %v1062 = vpop.f32.mrb[0].mxu0
    %v1063 = vpop.f32.mrb[0].mxu0
    %v1064 = vpop.f32.mrb[0].mxu0
    %1065 = vdwg.mxu0
    %1066 = vmatprep.subr.bf16.mxu0 0
    %1067 = vmatpush1.bf16.msra.mxu0 %v914
    %1068 = vmatprep.subr.bf16.mxu0 0
    %1069 = vmatpush1.bf16.msra.mxu0 %v915
    %1070 = vmatprep.subr.bf16.mxu0 0
    %1071 = vmatpush1.bf16.msra.mxu0 %v916
    %1072 = vmatprep.subr.bf16.mxu0 0
    %1073 = vmatpush1.bf16.msra.mxu0 %v917
    %1074 = vmatprep.subr.bf16.mxu0 0
    %1075 = vmatpush1.bf16.msra.mxu0 %v918
    %1076 = vmatprep.subr.bf16.mxu0 0
    %1077 = vmatpush1.bf16.msra.mxu0 %v919
    %1078 = vmatprep.subr.bf16.mxu0 0
    %1079 = vmatpush1.bf16.msra.mxu0 %v920
    %1080 = vmatprep.subr.bf16.mxu0 0
    %1081 = vmatpush1.bf16.msra.mxu0 %v921
    %1082 = vmatprep.subr.bf16.mxu0 0
    %1083 = vmatpush1.bf16.msra.mxu0 %v922
    %1084 = vmatprep.subr.bf16.mxu0 0
    %1085 = vmatpush1.bf16.msra.mxu0 %v923
    %1086 = vmatprep.subr.bf16.mxu0 0
    %1087 = vmatpush1.bf16.msra.mxu0 %v924
    %1088 = vmatprep.subr.bf16.mxu0 0
    %1089 = vmatpush1.bf16.msra.mxu0 %v925
    %1090 = vmatprep.subr.bf16.mxu0 0
    %1091 = vmatpush1.bf16.msra.mxu0 %v926
    %1092 = vmatprep.subr.bf16.mxu0 0
    %1093 = vmatpush1.bf16.msra.mxu0 %v927
    %1094 = vmatprep.subr.bf16.mxu0 0
    %1095 = vmatpush1.bf16.msra.mxu0 %v928
    %1096 = vmatprep.subr.bf16.mxu0 0
    %1097 = vmatpush1.bf16.msra.mxu0 %v929
    %1098 = vmatprep.mubr.bf16.mxu0 %v548
    %1099 = vmatmul.mubr.bf16.gmra.mrb[0].mxu0 %v547
    %v1100 = vpop.f32.mrb[0].mxu0
    %v1101 = vadd.f32 %v1061, %v1100
    %v1102 = vpop.f32.mrb[0].mxu0
    %v1103 = vpop.f32.mrb[0].mxu0
    %v1104 = vpop.f32.mrb[0].mxu0
    %1105 = vdwg.mxu0
    %1106 = vmatprep.subr.bf16.mxu0 0
    %1107 = vmatpush1.bf16.msra.mxu0 %v930
    %1108 = vmatprep.subr.bf16.mxu0 0
    %1109 = vmatpush1.bf16.msra.mxu0 %v931
    %1110 = vmatprep.subr.bf16.mxu0 0
    %1111 = vmatpush1.bf16.msra.mxu0 %v932
    %1112 = vmatprep.subr.bf16.mxu0 0
    %1113 = vmatpush1.bf16.msra.mxu0 %v933
    %1114 = vmatprep.subr.bf16.mxu0 0
    %1115 = vmatpush1.bf16.msra.mxu0 %v934
    %1116 = vmatprep.subr.bf16.mxu0 0
    %1117 = vmatpush1.bf16.msra.mxu0 %v935
    %1118 = vmatprep.subr.bf16.mxu0 0
    %1119 = vmatpush1.bf16.msra.mxu0 %v936
    %1120 = vmatprep.subr.bf16.mxu0 0
    %1121 = vmatpush1.bf16.msra.mxu0 %v937
    %1122 = vmatprep.subr.bf16.mxu0 0
    %1123 = vmatpush1.bf16.msra.mxu0 %v938
    %1124 = vmatprep.subr.bf16.mxu0 0
    %1125 = vmatpush1.bf16.msra.mxu0 %v939
    %1126 = vmatprep.subr.bf16.mxu0 0
    %1127 = vmatpush1.bf16.msra.mxu0 %v940
    %1128 = vmatprep.subr.bf16.mxu0 0
    %1129 = vmatpush1.bf16.msra.mxu0 %v941
    %1130 = vmatprep.subr.bf16.mxu0 0
    %1131 = vmatpush1.bf16.msra.mxu0 %v942
    %1132 = vmatprep.subr.bf16.mxu0 0
    %1133 = vmatpush1.bf16.msra.mxu0 %v943
    %1134 = vmatprep.subr.bf16.mxu0 0
    %1135 = vmatpush1.bf16.msra.mxu0 %v944
    %1136 = vmatprep.subr.bf16.mxu0 0
    %1137 = vmatpush1.bf16.msra.mxu0 %v945
    %1138 = vmatprep.mubr.bf16.mxu0 %v550
    %1139 = vmatmul.mubr.bf16.gmra.mrb[0].mxu0 %v549
    %v1140 = vpop.f32.mrb[0].mxu0
    %v1141 = vadd.f32 %v1101, %v1140
    %v1142 = vpop.f32.mrb[0].mxu0
    %v1143 = vpop.f32.mrb[0].mxu0
    %v1144 = vpop.f32.mrb[0].mxu0
    %1145 = vdwg.mxu0
    %1146 = vmatprep.subr.bf16.mxu0 0
    %1147 = vmatpush1.bf16.msra.mxu0 %v946
    %1148 = vmatprep.subr.bf16.mxu0 0
    %1149 = vmatpush1.bf16.msra.mxu0 %v947
    %1150 = vmatprep.subr.bf16.mxu0 0
    %1151 = vmatpush1.bf16.msra.mxu0 %v948
    %1152 = vmatprep.subr.bf16.mxu0 0
    %1153 = vmatpush1.bf16.msra.mxu0 %v949
    %1154 = vmatprep.subr.bf16.mxu0 0
    %1155 = vmatpush1.bf16.msra.mxu0 %v950
    %1156 = vmatprep.subr.bf16.mxu0 0
    %1157 = vmatpush1.bf16.msra.mxu0 %v951
    %1158 = vmatprep.subr.bf16.mxu0 0
    %1159 = vmatpush1.bf16.msra.mxu0 %v952
    %1160 = vmatprep.subr.bf16.mxu0 0
    %1161 = vmatpush1.bf16.msra.mxu0 %v953
    %1162 = vmatprep.subr.bf16.mxu0 0
    %1163 = vmatpush1.bf16.msra.mxu0 %v954
    %1164 = vmatprep.subr.bf16.mxu0 0
    %1165 = vmatpush1.bf16.msra.mxu0 %v955
    %1166 = vmatprep.subr.bf16.mxu0 0
    %1167 = vmatpush1.bf16.msra.mxu0 %v956
    %1168 = vmatprep.subr.bf16.mxu0 0
    %1169 = vmatpush1.bf16.msra.mxu0 %v957
    %1170 = vmatprep.subr.bf16.mxu0 0
    %1171 = vmatpush1.bf16.msra.mxu0 %v958
    %1172 = vmatprep.subr.bf16.mxu0 0
    %1173 = vmatpush1.bf16.msra.mxu0 %v959
    %1174 = vmatprep.subr.bf16.mxu0 0
    %1175 = vmatpush1.bf16.msra.mxu0 %v960
    %1176 = vmatprep.subr.bf16.mxu0 0
    %1177 = vmatpush1.bf16.msra.mxu0 %v961
    %1178 = vmatprep.mubr.bf16.mxu0 %v552
    %1179 = vmatmul.mubr.bf16.gmra.mrb[0].mxu0 %v551
    %v1180 = vpop.f32.mrb[0].mxu0
    %v1181 = vadd.f32 %v1141, %v1180
    %v1182 = vpop.f32.mrb[0].mxu0
    %v1183 = vpop.f32.mrb[0].mxu0
    %v1184 = vpop.f32.mrb[0].mxu0
    %1185 = vdwg.mxu0
    %v1186 = vlaneseq
    %v1187 = vshrl.u32 %v1186, 7
    %v1188 = vsub.s32 0, %v1187
    %v1189 = vrot.slane %v27, %v1188
    %v1190 = vadd.f32 %v1181, %v1189
    %vm1191 = vcmask 41984
    %1192 = vst.msk [vmem:[#allocation2] sm:$0x3] %vm1191, %v1190
    // Predicated region
    $region26: #{tpu_custom_call.1} parent=1 // pred_check
      _
    $region27: #{tpu_custom_call.1} parent=1 // pred_check_branch
      %1194 = sbr.rel (0) target = $region29
    $region28: #{tpu_custom_call.1} parent=1 // pred_region
      %s1196 = ssub.s32 32, 32
      %1197 = vsyncadd [#allocation3], %s1196
      %s1199 = sshll.u32 [#allocation2], 4
      %s1200 = int_to_ptr.vmem [resolvable:$true] %s1199
      %1202 = dma.vmem_to_hbm [thread:$0]  %s1200, 32, %s6, [#allocation3]
    $region29: #{tpu_custom_call.1} parent=1 // pred_fallthru
      _
    // Predicated region
    $region30: #{tpu_custom_call.1} parent=1 // pred_check
      _
    $region31: #{tpu_custom_call.1} parent=1 // pred_check_branch
      %1204 = sbr.rel (0) target = $region33
    $region32: #{tpu_custom_call.1} parent=1 // pred_region
      %1205 = dma.done [#allocation3], 32
    $region33: #{tpu_custom_call.1} parent=1 // pred_fallthru
      _
    %1206 = vsyncpa [#allocation3], 1

</llo_original>
